<compile_context>
chip_gen: v6e
topology: v6e:2x2x1
jax: 0.10.0
libtpu: 0.0.40
codegen_flags: <defaults>
</compile_context>

<pallas_src>
import functools

import jax
import jax.numpy as jnp
from jax import lax
from jax.experimental import pallas as pl
from jax.experimental.pallas import tpu as pltpu


def _dwconv_nhwc_kernel(x_ref, w_ref, b_ref, o_ref, xpad_ref, *, th):
    """Depthwise 'same' conv for one (image, channel-tile) block, NHWC layout.

    x_ref    : (1, H, W, TC)        input tile            (VMEM)
    w_ref    : (k, k, TC)           per-channel taps      (VMEM, lane vectors)
    b_ref    : (1, TC)              per-channel bias      (VMEM, lane vector)
    o_ref    : (1, H, W, TC)        output tile           (VMEM)
    xpad_ref : (H+k-1, W+k-1, TC)   padded scratch, input dtype (VMEM)
    th       : row-tile height (static), divides H
    """
    _, H, W, C = o_ref.shape
    k = w_ref.shape[0]
    Hp, Wp = xpad_ref.shape[0], xpad_ref.shape[1]
    pad_lo = (k - 1) // 2          # top / left   (matches torch 'same' & XLA SAME)
    pad_hi = (k - 1) - pad_lo      # bottom / right
    xdt = xpad_ref.dtype

    # ---- build the 'same'-padded image in VMEM scratch (input dtype) --------
    # Halo is re-zeroed every grid step (required under megacore grid sharding:
    # do NOT gate this on pl.program_id == 0).
    if pad_lo > 0:
        xpad_ref[0:pad_lo, :, :] = jnp.zeros((pad_lo, Wp, C), xdt)
        xpad_ref[:, 0:pad_lo, :] = jnp.zeros((Hp, pad_lo, C), xdt)
    if pad_hi > 0:
        xpad_ref[pad_lo + H:Hp, :, :] = jnp.zeros((pad_hi, Wp, C), xdt)
        xpad_ref[:, pad_lo + W:Wp, :] = jnp.zeros((Hp, pad_hi, C), xdt)
    xpad_ref[pad_lo:pad_lo + H, pad_lo:pad_lo + W, :] = x_ref[0]

    # ---- hoisted per-grid-step constants ------------------------------------
    # k*k weight lane vectors (f32) and the bias broadcast: loaded / built once.
    w_vec = [[w_ref[p, q, :].astype(jnp.float32) for q in range(k)]
             for p in range(k)]
    bias_tile = jnp.zeros((th, W, C), jnp.float32) + b_ref[0, :].astype(jnp.float32)

    n_tiles = H // th

    # ---- row-tiled, register-resident accumulation --------------------------
    def row_tile(r0):
        acc = bias_tile                                   # acc starts at bias
        for p in range(k):
            for q in range(k):
                tap = xpad_ref[pl.ds(r0 + p, th), pl.ds(q, W), :].astype(jnp.float32)
                acc = acc + tap * w_vec[p][q]             # pure VPU FMA per tap
        o_ref[0, pl.ds(r0, th), :, :] = acc.astype(o_ref.dtype)

    if n_tiles <= 8:
        # Short trip count: static unroll gives the LLO scheduler full visibility.
        for t in range(n_tiles):
            row_tile(t * th)
    else:
        @pl.loop(0, n_tiles)
        def _(t):
            row_tile(pl.multiple_of(t * th, th))


def _pick_tiles(H, W, Cp):
    """Choose (row-tile TH, channel-tile TC) so the acc stays ~16 vregs."""
    sub = -(-W // 8)                       # sublane rows per acc row
    tc = 128
    for cand in (512, 384, 256, 128):
        if Cp % cand == 0 and (cand // 128) * sub <= 16:
            tc = cand
            break
    lanes = tc // 128
    th_budget = max(1, 16 // max(1, sub * lanes))
    th = 1
    for cand in range(min(th_budget, H), 0, -1):
        if H % cand == 0:
            th = cand
            break
    return th, tc


def spatial_conv2d(x, weight, bias, choice_idx, kernel_size, init="random"):
    """x: (B, C, H, W); weight: (heads, 1, k, k); bias: (C,) or None."""
    B, C, H, W = x.shape
    k = kernel_size

    if init == "softmax":
        ws = weight.shape
        weight = jax.nn.softmax(weight.reshape(ws[0], ws[1], -1), axis=-1).reshape(ws)

    # Gather per-channel kernels (== self.weight[self.choice_idx]); lay them out
    # channels-last so each tap is a (C,) lane vector.
    w_sel = weight[choice_idx]                       # (C, 1, k, k)
    w_kkc = jnp.transpose(w_sel[:, 0], (1, 2, 0))    # (k, k, C)

    if bias is None:
        bias = jnp.zeros((C,), jnp.float32)
    bias = bias.astype(jnp.float32)

    # Lane-dense channels: pad C to a multiple of 128.  Padded channels get zero
    # weight & bias -> zero output -> sliced off below.
    Cp = ((C + 127) // 128) * 128
    if Cp != C:
        w_kkc = jnp.pad(w_kkc, ((0, 0), (0, 0), (0, Cp - C)))
        bias = jnp.pad(bias, (0, Cp - C))
    b2 = bias.reshape(1, Cp)

    # TODO(synk): in a real ConvMixer keep activations NHWC end-to-end and drop
    # these transposes.
    x_nhwc = jnp.transpose(x, (0, 2, 3, 1))          # (B, H, W, C)
    if Cp != C:
        x_nhwc = jnp.pad(x_nhwc, ((0, 0), (0, 0), (0, 0), (0, Cp - C)))

    th, tc = _pick_tiles(H, W, Cp)
    Hp, Wp = H + k - 1, W + k - 1
    n_ctiles = Cp // tc

    # Explicit scoped-VMEM budget: 2x double-buffered in + 2x out + scratch + params.
    itemsize = jnp.dtype(x.dtype).itemsize
    blk_bytes = H * W * tc * itemsize
    vmem_bytes = int(1.5 * (2 * blk_bytes + 2 * blk_bytes
                            + Hp * Wp * tc * itemsize
                            + 2 * k * k * tc * 4 + 2 * tc * 4)) + (2 << 20)
    vmem_bytes = min(max(vmem_bytes, 32 << 20), 64 << 20)

    kern = functools.partial(_dwconv_nhwc_kernel, th=th)

    out_nhwc = pl.pallas_call(
        kern,
        out_shape=jax.ShapeDtypeStruct((B, H, W, Cp), x.dtype),
        grid_spec=pltpu.PrefetchScalarGridSpec(
            num_scalar_prefetch=0,
            grid=(B, n_ctiles),
            in_specs=[
                pl.BlockSpec((1, H, W, tc), lambda b, c: (b, 0, 0, c)),
                pl.BlockSpec((k, k, tc), lambda b, c: (0, 0, c)),
                pl.BlockSpec((1, tc), lambda b, c: (0, c)),
            ],
            out_specs=pl.BlockSpec((1, H, W, tc), lambda b, c: (b, 0, 0, c)),
            scratch_shapes=[pltpu.VMEM((Hp, Wp, tc), x_nhwc.dtype)],
        ),
        compiler_params=pltpu.CompilerParams(
            dimension_semantics=("parallel", "parallel"),
            vmem_limit_bytes=vmem_bytes,
        ),
    )(x_nhwc, w_kkc, b2)

    if Cp != C:
        out_nhwc = out_nhwc[..., :C]
    return jnp.transpose(out_nhwc, (0, 3, 1, 2))     # back to NCHW


def make_params(key, C, kernel_size, heads=-1, bias=True):
    """Deterministic re-implementation of SpatialConv2d.__init__ (init='random')."""
    k = kernel_size
    kw, kb, kc = jax.random.split(key, 3)
    if (heads < 1) or (heads > C):
        heads = C
    weight = (1.0 / k) * (2.0 * jax.random.uniform(kw, (C, 1, k, k), jnp.float32) - 1.0)
    weight = weight[:heads]
    # choice_idx ~ np.random.choice(heads, C, replace=heads < C) (distribution
    # differs slightly, harmless for the kernel semantics)
    if heads < C:
        choice_idx = jax.random.randint(kc, (C,), 0, heads)
    else:
        choice_idx = jax.random.permutation(kc, jnp.arange(C))
    if bias:
        b = (1.0 / k) * (2.0 * jax.random.uniform(kb, (C,), jnp.float32) - 1.0)
    else:
        b = None
    return weight, b, choice_idx


def reference(x, weight, bias, choice_idx, kernel_size):
    """Pure-JAX reference: grouped conv2d, padding='same', groups=C."""
    C = x.shape[1]
    w_sel = weight[choice_idx]  # (C, 1, k, k)
    out = lax.conv_general_dilated(
        x, w_sel, window_strides=(1, 1), padding="SAME",
        dimension_numbers=("NCHW", "OIHW", "NCHW"),
        feature_group_count=C)
    if bias is not None:
        out = out + bias.reshape(1, C, 1, 1)
    return out


if __name__ == "__main__":
    key = jax.random.PRNGKey(0)
    kernel_size = 3

    # Case 1: small ConvMixer-like tile (exercises the static-unroll row loop).
    B, C, H, W = 2, 4, 16, 16
    kx, kp, key = jax.random.split(key, 3)
    x = jax.random.normal(kx, (B, C, H, W), jnp.float32)
    weight, bias, choice_idx = make_params(kp, C, kernel_size)
    out = jax.block_until_ready(spatial_conv2d(x, weight, bias, choice_idx, kernel_size))
    ref = reference(x, weight, bias, choice_idx, kernel_size)
    assert out.shape == (B, C, H, W)
    assert jnp.allclose(out, ref, atol=1e-5, rtol=1e-5), "mismatch vs reference (case 1)"

    # Case 2: taller image (exercises the dynamic pl.loop row-tile path).
    B2, C2, H2, W2 = 1, 4, 80, 16
    kx2, kp2 = jax.random.split(key)
    x2 = jax.random.normal(kx2, (B2, C2, H2, W2), jnp.float32)
    w2, b2, ci2 = make_params(kp2, C2, kernel_size)
    out2 = jax.block_until_ready(spatial_conv2d(x2, w2, b2, ci2, kernel_size))
    ref2 = reference(x2, w2, b2, ci2, kernel_size)
    assert out2.shape == (B2, C2, H2, W2)
    assert jnp.allclose(out2, ref2, atol=1e-5, rtol=1e-5), "mismatch vs reference (case 2)"

    print("KERNEL_OK")
</pallas_src>

<mosaic_0001>
module attributes {stable_mosaic.version = 11 : i64} {
  func.func @_dwconv_nhwc_kernel(%arg0: i32, %arg1: i32, %arg2: memref<1x16x16x128xf32, #tpu.memory_space<vmem>>, %arg3: memref<3x3x128xf32, #tpu.memory_space<vmem>>, %arg4: memref<1x128xf32, #tpu.memory_space<vmem>>, %arg5: memref<1x16x16x128xf32, #tpu.memory_space<vmem>>, %arg6: memref<18x18x128xf32, #tpu.memory_space<vmem>>) attributes {dimension_semantics = [#tpu.dimension_semantics<parallel>, #tpu.dimension_semantics<parallel>], iteration_bounds = array<i64: 2, 1>, scalar_prefetch = 0 : i64, scratch_operands = 1 : i64, tpu.core_type = #tpu.core_type<tc>, window_params = [{transform_indices = @transform_0, window_bounds = array<i64: 1, 16, 16, 128>}, {transform_indices = @transform_1, window_bounds = array<i64: 3, 3, 128>}, {transform_indices = @transform_2, window_bounds = array<i64: 1, 128>}, {transform_indices = @transform_3, window_bounds = array<i64: 1, 16, 16, 128>}]} {
    %cst = arith.constant 0.000000e+00 : f32
    %0 = vector.broadcast %cst : f32 to vector<1x18x128xf32>
    %c0 = arith.constant 0 : index
    %c0_0 = arith.constant 0 : index
    %c0_1 = arith.constant 0 : index
    %1 = vector.load %arg6[%c0, %c0_0, %c0_1] : memref<18x18x128xf32, #tpu.memory_space<vmem>>, vector<1x18x128xf32>
    tpu.vector_store %arg6[%c0, %c0_0, %c0_1], %0 {strides = array<i32>} : memref<18x18x128xf32, #tpu.memory_space<vmem>>, vector<1x18x128xf32>,
    %cst_2 = arith.constant 0.000000e+00 : f32
    %2 = vector.broadcast %cst_2 : f32 to vector<18x1x128xf32>
    %c0_3 = arith.constant 0 : index
    %c0_4 = arith.constant 0 : index
    %c0_5 = arith.constant 0 : index
    %3 = vector.load %arg6[%c0_3, %c0_4, %c0_5] : memref<18x18x128xf32, #tpu.memory_space<vmem>>, vector<18x1x128xf32>
    tpu.vector_store %arg6[%c0_3, %c0_4, %c0_5], %2 {strides = array<i32>} : memref<18x18x128xf32, #tpu.memory_space<vmem>>, vector<18x1x128xf32>,
    %cst_6 = arith.constant 0.000000e+00 : f32
    %4 = vector.broadcast %cst_6 : f32 to vector<1x18x128xf32>
    %c17 = arith.constant 17 : index
    %c0_7 = arith.constant 0 : index
    %c0_8 = arith.constant 0 : index
    %5 = vector.load %arg6[%c17, %c0_7, %c0_8] : memref<18x18x128xf32, #tpu.memory_space<vmem>>, vector<1x18x128xf32>
    tpu.vector_store %arg6[%c17, %c0_7, %c0_8], %4 {strides = array<i32>} : memref<18x18x128xf32, #tpu.memory_space<vmem>>, vector<1x18x128xf32>,
    %cst_9 = arith.constant 0.000000e+00 : f32
    %6 = vector.broadcast %cst_9 : f32 to vector<18x1x128xf32>
    %c0_10 = arith.constant 0 : index
    %c17_11 = arith.constant 17 : index
    %c0_12 = arith.constant 0 : index
    %7 = vector.load %arg6[%c0_10, %c17_11, %c0_12] : memref<18x18x128xf32, #tpu.memory_space<vmem>>, vector<18x1x128xf32>
    tpu.vector_store %arg6[%c0_10, %c17_11, %c0_12], %6 {strides = array<i32>} : memref<18x18x128xf32, #tpu.memory_space<vmem>>, vector<18x1x128xf32>,
    %c0_13 = arith.constant 0 : index
    %c0_14 = arith.constant 0 : index
    %c0_15 = arith.constant 0 : index
    %c0_16 = arith.constant 0 : index
    %8 = vector.load %arg2[%c0_13, %c0_14, %c0_15, %c0_16] : memref<1x16x16x128xf32, #tpu.memory_space<vmem>>, vector<1x16x16x128xf32>
    %9 = vector.shape_cast %8 : vector<1x16x16x128xf32> to vector<16x16x128xf32>
    %c1 = arith.constant 1 : index
    %c1_17 = arith.constant 1 : index
    %c0_18 = arith.constant 0 : index
    %10 = vector.load %arg6[%c1, %c1_17, %c0_18] : memref<18x18x128xf32, #tpu.memory_space<vmem>>, vector<16x16x128xf32>
    tpu.vector_store %arg6[%c1, %c1_17, %c0_18], %9 {strides = array<i32>} : memref<18x18x128xf32, #tpu.memory_space<vmem>>, vector<16x16x128xf32>,
    %c0_19 = arith.constant 0 : index
    %c0_20 = arith.constant 0 : index
    %c0_21 = arith.constant 0 : index
    %11 = vector.load %arg3[%c0_19, %c0_20, %c0_21] : memref<3x3x128xf32, #tpu.memory_space<vmem>>, vector<1x1x128xf32>
    %12 = vector.shape_cast %11 : vector<1x1x128xf32> to vector<128xf32>
    %c0_22 = arith.constant 0 : index
    %c1_23 = arith.constant 1 : index
    %c0_24 = arith.constant 0 : index
    %13 = vector.load %arg3[%c0_22, %c1_23, %c0_24] : memref<3x3x128xf32, #tpu.memory_space<vmem>>, vector<1x1x128xf32>
    %14 = vector.shape_cast %13 : vector<1x1x128xf32> to vector<128xf32>
    %c0_25 = arith.constant 0 : index
    %c2 = arith.constant 2 : index
    %c0_26 = arith.constant 0 : index
    %15 = vector.load %arg3[%c0_25, %c2, %c0_26] : memref<3x3x128xf32, #tpu.memory_space<vmem>>, vector<1x1x128xf32>
    %16 = vector.shape_cast %15 : vector<1x1x128xf32> to vector<128xf32>
    %c1_27 = arith.constant 1 : index
    %c0_28 = arith.constant 0 : index
    %c0_29 = arith.constant 0 : index
    %17 = vector.load %arg3[%c1_27, %c0_28, %c0_29] : memref<3x3x128xf32, #tpu.memory_space<vmem>>, vector<1x1x128xf32>
    %18 = vector.shape_cast %17 : vector<1x1x128xf32> to vector<128xf32>
    %c1_30 = arith.constant 1 : index
    %c1_31 = arith.constant 1 : index
    %c0_32 = arith.constant 0 : index
    %19 = vector.load %arg3[%c1_30, %c1_31, %c0_32] : memref<3x3x128xf32, #tpu.memory_space<vmem>>, vector<1x1x128xf32>
    %20 = vector.shape_cast %19 : vector<1x1x128xf32> to vector<128xf32>
    %c1_33 = arith.constant 1 : index
    %c2_34 = arith.constant 2 : index
    %c0_35 = arith.constant 0 : index
    %21 = vector.load %arg3[%c1_33, %c2_34, %c0_35] : memref<3x3x128xf32, #tpu.memory_space<vmem>>, vector<1x1x128xf32>
    %22 = vector.shape_cast %21 : vector<1x1x128xf32> to vector<128xf32>
    %c2_36 = arith.constant 2 : index
    %c0_37 = arith.constant 0 : index
    %c0_38 = arith.constant 0 : index
    %23 = vector.load %arg3[%c2_36, %c0_37, %c0_38] : memref<3x3x128xf32, #tpu.memory_space<vmem>>, vector<1x1x128xf32>
    %24 = vector.shape_cast %23 : vector<1x1x128xf32> to vector<128xf32>
    %c2_39 = arith.constant 2 : index
    %c1_40 = arith.constant 1 : index
    %c0_41 = arith.constant 0 : index
    %25 = vector.load %arg3[%c2_39, %c1_40, %c0_41] : memref<3x3x128xf32, #tpu.memory_space<vmem>>, vector<1x1x128xf32>
    %26 = vector.shape_cast %25 : vector<1x1x128xf32> to vector<128xf32>
    %c2_42 = arith.constant 2 : index
    %c2_43 = arith.constant 2 : index
    %c0_44 = arith.constant 0 : index
    %27 = vector.load %arg3[%c2_42, %c2_43, %c0_44] : memref<3x3x128xf32, #tpu.memory_space<vmem>>, vector<1x1x128xf32>
    %28 = vector.shape_cast %27 : vector<1x1x128xf32> to vector<128xf32>
    %cst_45 = arith.constant 0.000000e+00 : f32
    %29 = vector.broadcast %cst_45 : f32 to vector<8x16x128xf32>
    %c0_46 = arith.constant 0 : index
    %c0_47 = arith.constant 0 : index
    %30 = vector.load %arg4[%c0_46, %c0_47] : memref<1x128xf32, #tpu.memory_space<vmem>>, vector<1x128xf32>
    %31 = vector.shape_cast %30 : vector<1x128xf32> to vector<128xf32>
    %32 = vector.shape_cast %31 : vector<128xf32> to vector<1x1x128xf32>
    %33 = vector.broadcast %32 : vector<1x1x128xf32> to vector<8x16x128xf32>
    %34 = arith.addf %29, %33 : vector<8x16x128xf32>
    %c0_48 = arith.constant 0 : index
    %c0_49 = arith.constant 0 : index
    %c0_50 = arith.constant 0 : index
    %35 = vector.load %arg6[%c0_48, %c0_49, %c0_50] : memref<18x18x128xf32, #tpu.memory_space<vmem>>, vector<8x16x128xf32>
    %36 = vector.shape_cast %12 : vector<128xf32> to vector<1x1x128xf32>
    %37 = vector.broadcast %36 : vector<1x1x128xf32> to vector<8x16x128xf32>
    %38 = arith.mulf %35, %37 : vector<8x16x128xf32>
    %39 = arith.addf %34, %38 : vector<8x16x128xf32>
    %c0_51 = arith.constant 0 : index
    %c1_52 = arith.constant 1 : index
    %c0_53 = arith.constant 0 : index
    %40 = vector.load %arg6[%c0_51, %c1_52, %c0_53] : memref<18x18x128xf32, #tpu.memory_space<vmem>>, vector<8x16x128xf32>
    %41 = vector.shape_cast %14 : vector<128xf32> to vector<1x1x128xf32>
    %42 = vector.broadcast %41 : vector<1x1x128xf32> to vector<8x16x128xf32>
    %43 = arith.mulf %40, %42 : vector<8x16x128xf32>
    %44 = arith.addf %39, %43 : vector<8x16x128xf32>
    %c0_54 = arith.constant 0 : index
    %c2_55 = arith.constant 2 : index
    %c0_56 = arith.constant 0 : index
    %45 = vector.load %arg6[%c0_54, %c2_55, %c0_56] : memref<18x18x128xf32, #tpu.memory_space<vmem>>, vector<8x16x128xf32>
    %46 = vector.shape_cast %16 : vector<128xf32> to vector<1x1x128xf32>
    %47 = vector.broadcast %46 : vector<1x1x128xf32> to vector<8x16x128xf32>
    %48 = arith.mulf %45, %47 : vector<8x16x128xf32>
    %49 = arith.addf %44, %48 : vector<8x16x128xf32>
    %c1_57 = arith.constant 1 : index
    %c0_58 = arith.constant 0 : index
    %c0_59 = arith.constant 0 : index
    %50 = vector.load %arg6[%c1_57, %c0_58, %c0_59] : memref<18x18x128xf32, #tpu.memory_space<vmem>>, vector<8x16x128xf32>
    %51 = vector.shape_cast %18 : vector<128xf32> to vector<1x1x128xf32>
    %52 = vector.broadcast %51 : vector<1x1x128xf32> to vector<8x16x128xf32>
    %53 = arith.mulf %50, %52 : vector<8x16x128xf32>
    %54 = arith.addf %49, %53 : vector<8x16x128xf32>
    %c1_60 = arith.constant 1 : index
    %c1_61 = arith.constant 1 : index
    %c0_62 = arith.constant 0 : index
    %55 = vector.load %arg6[%c1_60, %c1_61, %c0_62] : memref<18x18x128xf32, #tpu.memory_space<vmem>>, vector<8x16x128xf32>
    %56 = vector.shape_cast %20 : vector<128xf32> to vector<1x1x128xf32>
    %57 = vector.broadcast %56 : vector<1x1x128xf32> to vector<8x16x128xf32>
    %58 = arith.mulf %55, %57 : vector<8x16x128xf32>
    %59 = arith.addf %54, %58 : vector<8x16x128xf32>
    %c1_63 = arith.constant 1 : index
    %c2_64 = arith.constant 2 : index
    %c0_65 = arith.constant 0 : index
    %60 = vector.load %arg6[%c1_63, %c2_64, %c0_65] : memref<18x18x128xf32, #tpu.memory_space<vmem>>, vector<8x16x128xf32>
    %61 = vector.shape_cast %22 : vector<128xf32> to vector<1x1x128xf32>
    %62 = vector.broadcast %61 : vector<1x1x128xf32> to vector<8x16x128xf32>
    %63 = arith.mulf %60, %62 : vector<8x16x128xf32>
    %64 = arith.addf %59, %63 : vector<8x16x128xf32>
    %c2_66 = arith.constant 2 : index
    %c0_67 = arith.constant 0 : index
    %c0_68 = arith.constant 0 : index
    %65 = vector.load %arg6[%c2_66, %c0_67, %c0_68] : memref<18x18x128xf32, #tpu.memory_space<vmem>>, vector<8x16x128xf32>
    %66 = vector.shape_cast %24 : vector<128xf32> to vector<1x1x128xf32>
    %67 = vector.broadcast %66 : vector<1x1x128xf32> to vector<8x16x128xf32>
    %68 = arith.mulf %65, %67 : vector<8x16x128xf32>
    %69 = arith.addf %64, %68 : vector<8x16x128xf32>
    %c2_69 = arith.constant 2 : index
    %c1_70 = arith.constant 1 : index
    %c0_71 = arith.constant 0 : index
    %70 = vector.load %arg6[%c2_69, %c1_70, %c0_71] : memref<18x18x128xf32, #tpu.memory_space<vmem>>, vector<8x16x128xf32>
    %71 = vector.shape_cast %26 : vector<128xf32> to vector<1x1x128xf32>
    %72 = vector.broadcast %71 : vector<1x1x128xf32> to vector<8x16x128xf32>
    %73 = arith.mulf %70, %72 : vector<8x16x128xf32>
    %74 = arith.addf %69, %73 : vector<8x16x128xf32>
    %c2_72 = arith.constant 2 : index
    %c2_73 = arith.constant 2 : index
    %c0_74 = arith.constant 0 : index
    %75 = vector.load %arg6[%c2_72, %c2_73, %c0_74] : memref<18x18x128xf32, #tpu.memory_space<vmem>>, vector<8x16x128xf32>
    %76 = vector.shape_cast %28 : vector<128xf32> to vector<1x1x128xf32>
    %77 = vector.broadcast %76 : vector<1x1x128xf32> to vector<8x16x128xf32>
    %78 = arith.mulf %75, %77 : vector<8x16x128xf32>
    %79 = arith.addf %74, %78 : vector<8x16x128xf32>
    %c0_75 = arith.constant 0 : index
    %c0_76 = arith.constant 0 : index
    %c0_77 = arith.constant 0 : index
    %c0_78 = arith.constant 0 : index
    %80 = vector.load %arg5[%c0_75, %c0_76, %c0_77, %c0_78] : memref<1x16x16x128xf32, #tpu.memory_space<vmem>>, vector<1x8x16x128xf32>
    %81 = vector.shape_cast %80 : vector<1x8x16x128xf32> to vector<8x16x128xf32>
    %82 = vector.shape_cast %79 : vector<8x16x128xf32> to vector<1x8x16x128xf32>
    tpu.vector_store %arg5[%c0_75, %c0_76, %c0_77, %c0_78], %82 {strides = array<i32>} : memref<1x16x16x128xf32, #tpu.memory_space<vmem>>, vector<1x8x16x128xf32>,
    %c8 = arith.constant 8 : index
    %c0_79 = arith.constant 0 : index
    %c0_80 = arith.constant 0 : index
    %83 = vector.load %arg6[%c8, %c0_79, %c0_80] : memref<18x18x128xf32, #tpu.memory_space<vmem>>, vector<8x16x128xf32>
    %84 = vector.shape_cast %12 : vector<128xf32> to vector<1x1x128xf32>
    %85 = vector.broadcast %84 : vector<1x1x128xf32> to vector<8x16x128xf32>
    %86 = arith.mulf %83, %85 : vector<8x16x128xf32>
    %87 = arith.addf %34, %86 : vector<8x16x128xf32>
    %c8_81 = arith.constant 8 : index
    %c1_82 = arith.constant 1 : index
    %c0_83 = arith.constant 0 : index
    %88 = vector.load %arg6[%c8_81, %c1_82, %c0_83] : memref<18x18x128xf32, #tpu.memory_space<vmem>>, vector<8x16x128xf32>
    %89 = vector.shape_cast %14 : vector<128xf32> to vector<1x1x128xf32>
    %90 = vector.broadcast %89 : vector<1x1x128xf32> to vector<8x16x128xf32>
    %91 = arith.mulf %88, %90 : vector<8x16x128xf32>
    %92 = arith.addf %87, %91 : vector<8x16x128xf32>
    %c8_84 = arith.constant 8 : index
    %c2_85 = arith.constant 2 : index
    %c0_86 = arith.constant 0 : index
    %93 = vector.load %arg6[%c8_84, %c2_85, %c0_86] : memref<18x18x128xf32, #tpu.memory_space<vmem>>, vector<8x16x128xf32>
    %94 = vector.shape_cast %16 : vector<128xf32> to vector<1x1x128xf32>
    %95 = vector.broadcast %94 : vector<1x1x128xf32> to vector<8x16x128xf32>
    %96 = arith.mulf %93, %95 : vector<8x16x128xf32>
    %97 = arith.addf %92, %96 : vector<8x16x128xf32>
    %c9 = arith.constant 9 : index
    %c0_87 = arith.constant 0 : index
    %c0_88 = arith.constant 0 : index
    %98 = vector.load %arg6[%c9, %c0_87, %c0_88] : memref<18x18x128xf32, #tpu.memory_space<vmem>>, vector<8x16x128xf32>
    %99 = vector.shape_cast %18 : vector<128xf32> to vector<1x1x128xf32>
    %100 = vector.broadcast %99 : vector<1x1x128xf32> to vector<8x16x128xf32>
    %101 = arith.mulf %98, %100 : vector<8x16x128xf32>
    %102 = arith.addf %97, %101 : vector<8x16x128xf32>
    %c9_89 = arith.constant 9 : index
    %c1_90 = arith.constant 1 : index
    %c0_91 = arith.constant 0 : index
    %103 = vector.load %arg6[%c9_89, %c1_90, %c0_91] : memref<18x18x128xf32, #tpu.memory_space<vmem>>, vector<8x16x128xf32>
    %104 = vector.shape_cast %20 : vector<128xf32> to vector<1x1x128xf32>
    %105 = vector.broadcast %104 : vector<1x1x128xf32> to vector<8x16x128xf32>
    %106 = arith.mulf %103, %105 : vector<8x16x128xf32>
    %107 = arith.addf %102, %106 : vector<8x16x128xf32>
    %c9_92 = arith.constant 9 : index
    %c2_93 = arith.constant 2 : index
    %c0_94 = arith.constant 0 : index
    %108 = vector.load %arg6[%c9_92, %c2_93, %c0_94] : memref<18x18x128xf32, #tpu.memory_space<vmem>>, vector<8x16x128xf32>
    %109 = vector.shape_cast %22 : vector<128xf32> to vector<1x1x128xf32>
    %110 = vector.broadcast %109 : vector<1x1x128xf32> to vector<8x16x128xf32>
    %111 = arith.mulf %108, %110 : vector<8x16x128xf32>
    %112 = arith.addf %107, %111 : vector<8x16x128xf32>
    %c10 = arith.constant 10 : index
    %c0_95 = arith.constant 0 : index
    %c0_96 = arith.constant 0 : index
    %113 = vector.load %arg6[%c10, %c0_95, %c0_96] : memref<18x18x128xf32, #tpu.memory_space<vmem>>, vector<8x16x128xf32>
    %114 = vector.shape_cast %24 : vector<128xf32> to vector<1x1x128xf32>
    %115 = vector.broadcast %114 : vector<1x1x128xf32> to vector<8x16x128xf32>
    %116 = arith.mulf %113, %115 : vector<8x16x128xf32>
    %117 = arith.addf %112, %116 : vector<8x16x128xf32>
    %c10_97 = arith.constant 10 : index
    %c1_98 = arith.constant 1 : index
    %c0_99 = arith.constant 0 : index
    %118 = vector.load %arg6[%c10_97, %c1_98, %c0_99] : memref<18x18x128xf32, #tpu.memory_space<vmem>>, vector<8x16x128xf32>
    %119 = vector.shape_cast %26 : vector<128xf32> to vector<1x1x128xf32>
    %120 = vector.broadcast %119 : vector<1x1x128xf32> to vector<8x16x128xf32>
    %121 = arith.mulf %118, %120 : vector<8x16x128xf32>
    %122 = arith.addf %117, %121 : vector<8x16x128xf32>
    %c10_100 = arith.constant 10 : index
    %c2_101 = arith.constant 2 : index
    %c0_102 = arith.constant 0 : index
    %123 = vector.load %arg6[%c10_100, %c2_101, %c0_102] : memref<18x18x128xf32, #tpu.memory_space<vmem>>, vector<8x16x128xf32>
    %124 = vector.shape_cast %28 : vector<128xf32> to vector<1x1x128xf32>
    %125 = vector.broadcast %124 : vector<1x1x128xf32> to vector<8x16x128xf32>
    %126 = arith.mulf %123, %125 : vector<8x16x128xf32>
    %127 = arith.addf %122, %126 : vector<8x16x128xf32>
    %c0_103 = arith.constant 0 : index
    %c8_104 = arith.constant 8 : index
    %c0_105 = arith.constant 0 : index
    %c0_106 = arith.constant 0 : index
    %128 = vector.load %arg5[%c0_103, %c8_104, %c0_105, %c0_106] : memref<1x16x16x128xf32, #tpu.memory_space<vmem>>, vector<1x8x16x128xf32>
    %129 = vector.shape_cast %128 : vector<1x8x16x128xf32> to vector<8x16x128xf32>
    %130 = vector.shape_cast %127 : vector<8x16x128xf32> to vector<1x8x16x128xf32>
    tpu.vector_store %arg5[%c0_103, %c8_104, %c0_105, %c0_106], %130 {strides = array<i32>} : memref<1x16x16x128xf32, #tpu.memory_space<vmem>>, vector<1x8x16x128xf32>,
    return
  }
  func.func @transform_0(%arg0: i32, %arg1: i32) -> (i32, i32, i32, i32) {
    %c0_i32 = arith.constant 0 : i32
    %c0_i32_0 = arith.constant 0 : i32
    %c0_i32_1 = arith.constant 0 : i32
    return %arg0, %c0_i32, %c0_i32_0, %arg1 : i32, i32, i32, i32
  }
  func.func @transform_1(%arg0: i32, %arg1: i32) -> (i32, i32, i32) {
    %c0_i32 = arith.constant 0 : i32
    %c0_i32_0 = arith.constant 0 : i32
    %c0_i32_1 = arith.constant 0 : i32
    return %c0_i32, %c0_i32_0, %arg1 : i32, i32, i32
  }
  func.func @transform_2(%arg0: i32, %arg1: i32) -> (i32, i32) {
    %c0_i32 = arith.constant 0 : i32
    %c0_i32_0 = arith.constant 0 : i32
    return %c0_i32, %arg1 : i32, i32
  }
  func.func @transform_3(%arg0: i32, %arg1: i32) -> (i32, i32, i32, i32) {
    %c0_i32 = arith.constant 0 : i32
    %c0_i32_0 = arith.constant 0 : i32
    %c0_i32_1 = arith.constant 0 : i32
    return %arg0, %c0_i32, %c0_i32_0, %arg1 : i32, i32, i32, i32
  }
}

</mosaic_0001>

<llo_original>
// kernel: tpu_custom_call.1
$region0: #{tpu_custom_call.1}
  #allocation0 [shape = 'u32[]', space=smem, size = 0x4, offset = 0x4, fixed_abs, tag = 'smem constant byte address 0x4 - core index']
  #allocation1 [shape = 'u32[144,128]{1,0:T(1,128)}', space=vmem, size = 0x12000, scoped, tag = 'internal scratch']
  #allocation2 [shape = 'f32[18,18,128]{2,1,0:T(8,128)}', space=vmem, size = 0x36000, scoped, tag = 'scratch operand']
  %s0 = inlined_call_operand.hbm [shape: f32[2,16,16,128], index: 0, kind: input, shape index: {}]
  %s1 = inlined_call_operand.hbm [shape: f32[3,3,128], index: 1, kind: input, shape index: {}]
  %s2 = inlined_call_operand.vmem [shape: f32[1,128], index: 2, kind: input, shape index: {}]
  %s3 = inlined_call_operand.hbm [shape: f32[2,16,16,128], index: 3, kind: output, shape index: {}]
  %s4 = sld [smem:[#allocation0]]
  $region53: #{tpu_custom_call.1} parent=0
    _
  %s6 = ssub.s32 1, %s4
  %s7 = scalar_select 0, %s6, %s4
  $region1: #{tpu_custom_call.1} parent=0
    #allocation3 [shape = 'u8[262144]{0}', space=vmem, size = 0x40000, scoped, tag = 'input window, operand 0']
    #allocation4 [shape = 's32[2]{0}', space=sflag, size = 0x8, scoped, tag = 'scoped memory for tpu_custom_call.1']
    #allocation5 [shape = 's32[2]{0}', space=sflag, size = 0x8, scoped, tag = 'scoped memory for tpu_custom_call.1']
    #allocation6 [shape = 'u8[6144]{0}', space=vmem, size = 0x1800, scoped, tag = 'input window, operand 1, single buffered']
    #allocation7 [shape = 's32[1]{0}', space=sflag, size = 0x4, scoped, tag = 'scoped memory for tpu_custom_call.1']
    #allocation8 [shape = 'u8[262144]{0}', space=vmem, size = 0x40000, scoped, tag = 'output window, operand 0']
    %8 = vsyncpa [#allocation4], 0
    %s9 = scalar_lea.sflag [#allocation4], 1
    %10 = vsyncpa %s9, 0
    %11 = vsyncpa [#allocation7], 0
    %12 = vsyncpa [#allocation5], 0
    %s13 = scalar_lea.sflag [#allocation5], 1
    %14 = vsyncpa %s13, 0
    loop: start=0, step=1, limit=4
    $region2: #{tpu_custom_call.1} parent=1 // loop_pre_header
      _
    $region3: #{tpu_custom_call.1} parent=1 // loop_header
      %s16 = sphi 0, %s20
      %p17 = scmp.ge.s32.totalorder %s16, 4
      %s23 = sphi 0, %s35
      %s24 = sphi 0, %s31
      %s25 = sphi 0, %s23
      %s26 = sphi 0, %s24
      %s27 = sphi 0, %s25
      %s28 = sphi 0, %s26
      %s40 = sphi 0, %s42
      %s43 = sphi 0, %s40
      %s44 = sphi 0, %s43
      %s60 = sphi 0, %s44
      %s66 = sphi 0, %s68
      %s69 = sphi 0, %s66
      %s70 = sphi 0, %s69
      %s86 = sphi 0, %s70
      %s92 = sphi 0, %s94
      %s95 = sphi 0, %s92
      %s96 = sphi 0, %s95
      %s112 = sphi 0, %s96
      %s120 = sphi 0, %s122
      %s123 = sphi 0, %s120
      %s124 = sphi 0, %s123
      %s140 = sphi 0, %s124
    $region4: #{tpu_custom_call.1} parent=1 // loop_header_branch
      %19 = sbr.rel (%p17) target = $region8
    $region5: #{tpu_custom_call.1} parent=1 // loop_body
      %s21 = ssub.s32 %s16, 1
      %s22 = ssub.s32 %s16, 2
      %s29 = sadd.s32 1, %s24
      %p30 = scmp.ge.s32.totalorder %s29, 1
      %s31 = scalar_select %p30, 0, %s29
      %s32 = sadd.s32 1, %s23
      %s33 = scalar_select %p30, %s32, %s23
      %p34 = scmp.ge.s32.totalorder %s33, 2
      %s35 = scalar_select %p34, 0, %s33
      %s36 = ssub.s32 %s23, %s35
      %s37 = ssub.s32 %s24, %s31
      %s38 = sor.u32 %s36, %s37
      %p39 = scmp.eq.s32.totalorder %s38, 0
      %s41 = sadd.s32 %s40, 1
      %s42 = scalar_select %p39, %s40, %s41
      %p45 = pneg %p39
      %p46 = scmp.eq.s32.totalorder %s16, 1
      %p47 = por %p45, %p46
      %p48 = scmp.ne.s32.totalorder %s40, %s43
      %p49 = scmp.eq.s32.totalorder %s16, 0
      %p50 = por %p48, %p49
      %p51 = scmp.ne.s32.totalorder %s40, %s43
      %p52 = scmp.eq.s32.totalorder %s21, 1
      %p53 = por %p51, %p52
      %p54 = scmp.ne.s32.totalorder %s43, %s44
      %p55 = scmp.eq.s32.totalorder %s21, 0
      %p56 = por %p54, %p55
      %p57 = scmp.ne.s32.totalorder %s43, %s44
      %p58 = scmp.eq.s32.totalorder %s22, 1
      %p59 = por %p57, %p58
      %p61 = scmp.ne.s32.totalorder %s44, %s60
      %p62 = scmp.eq.s32.totalorder %s22, 0
      %p63 = por %p61, %p62
      %s64 = ssub.s32 %s24, %s31
      %p65 = scmp.eq.s32.totalorder %s64, 0
      %s67 = sadd.s32 %s66, 1
      %s68 = scalar_select %p65, %s66, %s67
      %p71 = pneg %p65
      %p72 = scmp.eq.s32.totalorder %s16, 1
      %p73 = por %p71, %p72
      %p74 = scmp.ne.s32.totalorder %s66, %s69
      %p75 = scmp.eq.s32.totalorder %s16, 0
      %p76 = por %p74, %p75
      %p77 = scmp.ne.s32.totalorder %s66, %s69
      %p78 = scmp.eq.s32.totalorder %s21, 1
      %p79 = por %p77, %p78
      %p80 = scmp.ne.s32.totalorder %s69, %s70
      %p81 = scmp.eq.s32.totalorder %s21, 0
      %p82 = por %p80, %p81
      %p83 = scmp.ne.s32.totalorder %s69, %s70
      %p84 = scmp.eq.s32.totalorder %s22, 1
      %p85 = por %p83, %p84
      %p87 = scmp.ne.s32.totalorder %s70, %s86
      %p88 = scmp.eq.s32.totalorder %s22, 0
      %p89 = por %p87, %p88
      %s90 = ssub.s32 %s24, %s31
      %p91 = scmp.eq.s32.totalorder %s90, 0
      %s93 = sadd.s32 %s92, 1
      %s94 = scalar_select %p91, %s92, %s93
      %p97 = pneg %p91
      %p98 = scmp.eq.s32.totalorder %s16, 1
      %p99 = por %p97, %p98
      %p100 = scmp.ne.s32.totalorder %s92, %s95
      %p101 = scmp.eq.s32.totalorder %s16, 0
      %p102 = por %p100, %p101
      %p103 = scmp.ne.s32.totalorder %s92, %s95
      %p104 = scmp.eq.s32.totalorder %s21, 1
      %p105 = por %p103, %p104
      %p106 = scmp.ne.s32.totalorder %s95, %s96
      %p107 = scmp.eq.s32.totalorder %s21, 0
      %p108 = por %p106, %p107
      %p109 = scmp.ne.s32.totalorder %s95, %s96
      %p110 = scmp.eq.s32.totalorder %s22, 1
      %p111 = por %p109, %p110
      %p113 = scmp.ne.s32.totalorder %s96, %s112
      %p114 = scmp.eq.s32.totalorder %s22, 0
      %p115 = por %p113, %p114
      %s116 = ssub.s32 %s23, %s35
      %s117 = ssub.s32 %s24, %s31
      %s118 = sor.u32 %s116, %s117
      %p119 = scmp.eq.s32.totalorder %s118, 0
      %s121 = sadd.s32 %s120, 1
      %s122 = scalar_select %p119, %s120, %s121
      %p125 = pneg %p119
      %p126 = scmp.eq.s32.totalorder %s16, 1
      %p127 = por %p125, %p126
      %p128 = scmp.ne.s32.totalorder %s120, %s123
      %p129 = scmp.eq.s32.totalorder %s16, 0
      %p130 = por %p128, %p129
      %p131 = scmp.ne.s32.totalorder %s120, %s123
      %p132 = scmp.eq.s32.totalorder %s21, 1
      %p133 = por %p131, %p132
      %p134 = scmp.ne.s32.totalorder %s123, %s124
      %p135 = scmp.eq.s32.totalorder %s21, 0
      %p136 = por %p134, %p135
      %p137 = scmp.ne.s32.totalorder %s123, %s124
      %p138 = scmp.eq.s32.totalorder %s22, 1
      %p139 = por %p137, %p138
      %p141 = scmp.ne.s32.totalorder %s124, %s140
      %p142 = scmp.eq.s32.totalorder %s22, 0
      %p143 = por %p141, %p142
      %p144 = scmp.le.s32.totalorder 1, %s16
      %p145 = scmp.lt.s32.totalorder %s16, 3
      %p146 = pnand %p144, %p145
      %p147 = pneg %p146
      // Predicated region
      $region9: #{tpu_custom_call.1} parent=5 // pred_check
        _
      $region10: #{tpu_custom_call.1} parent=5 // pred_check_branch
        %149 = sbr.rel (%p146) target = $region12
      $region11: #{tpu_custom_call.1} parent=5 // pred_region
        %s150 = ssub.s32 %s16, 1
        // Predicated region
        $region13: #{tpu_custom_call.1} parent=11 // pred_check
          %p151 = pneg %p82
        $region14: #{tpu_custom_call.1} parent=11 // pred_check_branch
          %153 = sbr.rel (%p151) target = $region16
        $region15: #{tpu_custom_call.1} parent=11 // pred_region
          %s155 = ssub.s32 192, 192
          %156 = vsyncadd [#allocation7], %s155
          %s157 = smul.addr %s26, 64
          %s158 = scalar_lea.hbm %s1, %s157
          %s159 = sshll.u32 [#allocation6], 4
          %s160 = int_to_ptr.vmem [resolvable:$true] %s159
          %165 = dma.hbm_to_vmem [thread:$0]  %s158, 192, %s160, [#allocation7], 64, 64, 4
        $region16: #{tpu_custom_call.1} parent=11 // pred_fallthru
          _
        // Predicated region
        $region17: #{tpu_custom_call.1} parent=11 // pred_check
          %p166 = pneg %p108
        $region18: #{tpu_custom_call.1} parent=11 // pred_check_branch
          %168 = sbr.rel (%p166) target = $region20
        $region19: #{tpu_custom_call.1} parent=11 // pred_region
          %p169 = scmp.lt.s32.totalorder %s26, 0
          %s170 = scalar_select %p169, %s26, 0
          %s171 = scalar_lea.vmem %s2, %s170
        $region20: #{tpu_custom_call.1} parent=11 // pred_fallthru
          _
      $region12: #{tpu_custom_call.1} parent=5 // pred_fallthru
        _
      %p172 = scmp.lt.s32.totalorder %s16, 2
      // Predicated region
      $region21: #{tpu_custom_call.1} parent=5 // pred_check
        %p173 = pneg %p172
      $region22: #{tpu_custom_call.1} parent=5 // pred_check_branch
        %175 = sbr.rel (%p173) target = $region24
      $region23: #{tpu_custom_call.1} parent=5 // pred_region
        // Predicated region
        $region25: #{tpu_custom_call.1} parent=23 // pred_check
          %p176 = pneg %p50
        $region26: #{tpu_custom_call.1} parent=23 // pred_check_branch
          %178 = sbr.rel (%p176) target = $region28
        $region27: #{tpu_custom_call.1} parent=23 // pred_region
          %s179 = sand.u32 %s40, 1
          %s180 = scalar_lea.sflag [#allocation4], %s179
          %s181 = sand.u32 %s40, 1
          %s182 = smul.addr %s181, 256
          %s183 = scalar_lea.vmem [#allocation3], %s182
          %s185 = ssub.s32 4096, 4096
          %186 = vsyncadd %s180, %s185
          %s187 = smul.addr %s23, 32
          %s188 = sadd.s32 %s24, %s187
          %s189 = smul.addr %s188, 128
          %s190 = scalar_lea.hbm %s0, %s189
          %s191 = sshll.u32 %s183, 4
          %s192 = int_to_ptr.vmem [resolvable:$true] %s191
          %197 = dma.hbm_to_vmem [thread:$0]  %s190, 4096, %s192, %s180, 128, 128, 8
        $region28: #{tpu_custom_call.1} parent=23 // pred_fallthru
          _
      $region24: #{tpu_custom_call.1} parent=5 // pred_fallthru
        _
      %p198 = scmp.le.s32.totalorder 1, %s16
      %p199 = scmp.lt.s32.totalorder %s16, 3
      %p200 = pnand %p198, %p199
      %p201 = pneg %p200
      // Predicated region
      $region29: #{tpu_custom_call.1} parent=5 // pred_check
        _
      $region30: #{tpu_custom_call.1} parent=5 // pred_check_branch
        %203 = sbr.rel (%p200) target = $region32
      $region31: #{tpu_custom_call.1} parent=5 // pred_region
        %s204 = ssub.s32 %s16, 1
        %s205 = sand.u32 %s43, 1
        %s206 = scalar_lea.sflag [#allocation4], %s205
        %s207 = sand.u32 %s43, 1
        %s208 = smul.addr %s207, 256
        %s209 = scalar_lea.vmem [#allocation3], %s208
        // Predicated region
        $region33: #{tpu_custom_call.1} parent=31 // pred_check
          %p210 = pneg %p56
        $region34: #{tpu_custom_call.1} parent=31 // pred_check_branch
          %212 = sbr.rel (%p210) target = $region36
        $region35: #{tpu_custom_call.1} parent=31 // pred_region
          %213 = dma.done %s206, 4096
        $region36: #{tpu_custom_call.1} parent=31 // pred_fallthru
          _
        // Predicated region
        $region37: #{tpu_custom_call.1} parent=31 // pred_check
          %p214 = pneg %p82
        $region38: #{tpu_custom_call.1} parent=31 // pred_check_branch
          %216 = sbr.rel (%p214) target = $region40
        $region39: #{tpu_custom_call.1} parent=31 // pred_region
          %217 = dma.done [#allocation7], 192
        $region40: #{tpu_custom_call.1} parent=31 // pred_fallthru
          _
        %s218 = sand.u32 %s43, 1
        %s219 = scalar_lea.sflag [#allocation4], %s218
        %s220 = sand.u32 %s43, 1
        %s221 = smul.addr %s220, 256
        %s222 = scalar_lea.vmem [#allocation3], %s221
        %p223 = pneg %p56
        %p224 = pneg %p53
        %p225 = pneg %p82
        %p226 = pneg %p79
        %p227 = scmp.lt.s32.totalorder %s26, 0
        %s228 = scalar_select %p227, %s26, 0
        %s229 = scalar_lea.vmem %s2, %s228
        %p230 = pneg %p108
        %p231 = pneg %p105
        %p232 = pneg %p136
        %p233 = pneg %p133
        %s234 = sand.u32 %s123, 1
        %s235 = scalar_lea.sflag [#allocation5], %s234
        %s236 = sand.u32 %s123, 1
        %s237 = smul.addr %s236, 256
        %s238 = scalar_lea.vmem [#allocation8], %s237
        %p239 = scmp.lt.s32.totalorder %s26, 0
        %s240 = scalar_select %p239, %s26, 0
        %s241 = scalar_lea.vmem %s2, %s240
        %242 = vst [vmem:[#allocation2] sm:$0xff] 0.0
        %243 = vst [vmem:[#allocation2 + $0x8] sm:$0xff] 0.0
        %244 = vst [vmem:[#allocation2 + $0x10] sm:$0x3] 0.0
        %245 = vst [vmem:[#allocation2] sm:$0x1] 0.0
        %246 = vst [vmem:[#allocation2 + $0x18] sm:$0x1] 0.0
        %247 = vst [vmem:[#allocation2 + $0x30] sm:$0x1] 0.0
        %248 = vst [vmem:[#allocation2 + $0x48] sm:$0x1] 0.0
        %249 = vst [vmem:[#allocation2 + $0x60] sm:$0x1] 0.0
        %250 = vst [vmem:[#allocation2 + $0x78] sm:$0x1] 0.0
        %251 = vst [vmem:[#allocation2 + $0x90] sm:$0x1] 0.0
        %252 = vst [vmem:[#allocation2 + $0xa8] sm:$0x1] 0.0
        %253 = vst [vmem:[#allocation2 + $0xc0] sm:$0x1] 0.0
        %254 = vst [vmem:[#allocation2 + $0xd8] sm:$0x1] 0.0
        %255 = vst [vmem:[#allocation2 + $0xf0] sm:$0x1] 0.0
        %256 = vst [vmem:[#allocation2 + $0x108] sm:$0x1] 0.0
        %257 = vst [vmem:[#allocation2 + $0x120] sm:$0x1] 0.0
        %258 = vst [vmem:[#allocation2 + $0x138] sm:$0x1] 0.0
        %259 = vst [vmem:[#allocation2 + $0x150] sm:$0x1] 0.0
        %260 = vst [vmem:[#allocation2 + $0x168] sm:$0x1] 0.0
        %261 = vst [vmem:[#allocation2 + $0x180] sm:$0x1] 0.0
        %262 = vst [vmem:[#allocation2 + $0x198] sm:$0x1] 0.0
        %s263 = scalar_lea.vmem [#allocation2], 408
        %264 = vst [vmem:[%s263] sm:$0xff] 0.0
        %265 = vst [vmem:[%s263 + $0x8] sm:$0xff] 0.0
        %266 = vst [vmem:[%s263 + $0x10] sm:$0x3] 0.0
        %267 = vst [vmem:[#allocation2 + $0x11] sm:$0x1] 0.0
        %268 = vst [vmem:[#allocation2 + $0x29] sm:$0x1] 0.0
        %269 = vst [vmem:[#allocation2 + $0x41] sm:$0x1] 0.0
        %270 = vst [vmem:[#allocation2 + $0x59] sm:$0x1] 0.0
        %271 = vst [vmem:[#allocation2 + $0x71] sm:$0x1] 0.0
        %272 = vst [vmem:[#allocation2 + $0x89] sm:$0x1] 0.0
        %273 = vst [vmem:[#allocation2 + $0xa1] sm:$0x1] 0.0
        %274 = vst [vmem:[#allocation2 + $0xb9] sm:$0x1] 0.0
        %275 = vst [vmem:[#allocation2 + $0xd1] sm:$0x1] 0.0
        %276 = vst [vmem:[#allocation2 + $0xe9] sm:$0x1] 0.0
        %277 = vst [vmem:[#allocation2 + $0x101] sm:$0x1] 0.0
        %278 = vst [vmem:[#allocation2 + $0x119] sm:$0x1] 0.0
        %279 = vst [vmem:[#allocation2 + $0x131] sm:$0x1] 0.0
        %280 = vst [vmem:[#allocation2 + $0x149] sm:$0x1] 0.0
        %281 = vst [vmem:[#allocation2 + $0x161] sm:$0x1] 0.0
        %282 = vst [vmem:[#allocation2 + $0x179] sm:$0x1] 0.0
        %283 = vst [vmem:[#allocation2 + $0x191] sm:$0x1] 0.0
        %284 = vst [vmem:[#allocation2 + $0x1a9] sm:$0x1] 0.0
        %v285 = vld [vmem:[%s209] sm:$0xff]
        %v286 = vld [vmem:[%s209 + $0x8] sm:$0xff]
        %v287 = vld [vmem:[%s209 + $0x10] sm:$0xff]
        %v288 = vld [vmem:[%s209 + $0x18] sm:$0xff]
        %v289 = vld [vmem:[%s209 + $0x20] sm:$0xff]
        %v290 = vld [vmem:[%s209 + $0x28] sm:$0xff]
        %v291 = vld [vmem:[%s209 + $0x30] sm:$0xff]
        %v292 = vld [vmem:[%s209 + $0x38] sm:$0xff]
        %v293 = vld [vmem:[%s209 + $0x40] sm:$0xff]
        %v294 = vld [vmem:[%s209 + $0x48] sm:$0xff]
        %v295 = vld [vmem:[%s209 + $0x50] sm:$0xff]
        %v296 = vld [vmem:[%s209 + $0x58] sm:$0xff]
        %v297 = vld [vmem:[%s209 + $0x60] sm:$0xff]
        %v298 = vld [vmem:[%s209 + $0x68] sm:$0xff]
        %v299 = vld [vmem:[%s209 + $0x70] sm:$0xff]
        %v300 = vld [vmem:[%s209 + $0x78] sm:$0xff]
        %v301 = vld [vmem:[%s209 + $0x80] sm:$0xff]
        %v302 = vld [vmem:[%s209 + $0x88] sm:$0xff]
        %v303 = vld [vmem:[%s209 + $0x90] sm:$0xff]
        %v304 = vld [vmem:[%s209 + $0x98] sm:$0xff]
        %v305 = vld [vmem:[%s209 + $0xa0] sm:$0xff]
        %v306 = vld [vmem:[%s209 + $0xa8] sm:$0xff]
        %v307 = vld [vmem:[%s209 + $0xb0] sm:$0xff]
        %v308 = vld [vmem:[%s209 + $0xb8] sm:$0xff]
        %v309 = vld [vmem:[%s209 + $0xc0] sm:$0xff]
        %v310 = vld [vmem:[%s209 + $0xc8] sm:$0xff]
        %v311 = vld [vmem:[%s209 + $0xd0] sm:$0xff]
        %v312 = vld [vmem:[%s209 + $0xd8] sm:$0xff]
        %v313 = vld [vmem:[%s209 + $0xe0] sm:$0xff]
        %v314 = vld [vmem:[%s209 + $0xe8] sm:$0xff]
        %v315 = vld [vmem:[%s209 + $0xf0] sm:$0xff]
        %v316 = vld [vmem:[%s209 + $0xf8] sm:$0xff]
        %s317 = scalar_lea.vmem [#allocation2], 24
        %318 = vst [vmem:[%s317 + $0x1] sm:$0xff] %v285
        %319 = vst [vmem:[%s317 + $0x9] sm:$0xff] %v286
        %320 = vst [vmem:[%s317 + $0x19] sm:$0xff] %v287
        %321 = vst [vmem:[%s317 + $0x21] sm:$0xff] %v288
        %322 = vst [vmem:[%s317 + $0x31] sm:$0xff] %v289
        %323 = vst [vmem:[%s317 + $0x39] sm:$0xff] %v290
        %324 = vst [vmem:[%s317 + $0x49] sm:$0xff] %v291
        %325 = vst [vmem:[%s317 + $0x51] sm:$0xff] %v292
        %326 = vst [vmem:[%s317 + $0x61] sm:$0xff] %v293
        %327 = vst [vmem:[%s317 + $0x69] sm:$0xff] %v294
        %328 = vst [vmem:[%s317 + $0x79] sm:$0xff] %v295
        %329 = vst [vmem:[%s317 + $0x81] sm:$0xff] %v296
        %330 = vst [vmem:[%s317 + $0x91] sm:$0xff] %v297
        %331 = vst [vmem:[%s317 + $0x99] sm:$0xff] %v298
        %332 = vst [vmem:[%s317 + $0xa9] sm:$0xff] %v299
        %333 = vst [vmem:[%s317 + $0xb1] sm:$0xff] %v300
        %334 = vst [vmem:[%s317 + $0xc1] sm:$0xff] %v301
        %335 = vst [vmem:[%s317 + $0xc9] sm:$0xff] %v302
        %336 = vst [vmem:[%s317 + $0xd9] sm:$0xff] %v303
        %337 = vst [vmem:[%s317 + $0xe1] sm:$0xff] %v304
        %338 = vst [vmem:[%s317 + $0xf1] sm:$0xff] %v305
        %339 = vst [vmem:[%s317 + $0xf9] sm:$0xff] %v306
        %340 = vst [vmem:[%s317 + $0x109] sm:$0xff] %v307
        %341 = vst [vmem:[%s317 + $0x111] sm:$0xff] %v308
        %342 = vst [vmem:[%s317 + $0x121] sm:$0xff] %v309
        %343 = vst [vmem:[%s317 + $0x129] sm:$0xff] %v310
        %344 = vst [vmem:[%s317 + $0x139] sm:$0xff] %v311
        %345 = vst [vmem:[%s317 + $0x141] sm:$0xff] %v312
        %346 = vst [vmem:[%s317 + $0x151] sm:$0xff] %v313
        %347 = vst [vmem:[%s317 + $0x159] sm:$0xff] %v314
        %348 = vst [vmem:[%s317 + $0x169] sm:$0xff] %v315
        %349 = vst [vmem:[%s317 + $0x171] sm:$0xff] %v316
        %v350 = vld [vmem:[#allocation6] sm:$0x1]
        %v351 = vld [vmem:[#allocation6 + $0x1] sm:$0x1]
        %v352 = vld [vmem:[#allocation6 + $0x2] sm:$0x1]
        %s353 = scalar_lea.vmem [#allocation6], 4
        %v354 = vld [vmem:[%s353] sm:$0x1]
        %v355 = vld [vmem:[%s353 + $0x1] sm:$0x1]
        %v356 = vld [vmem:[%s353 + $0x2] sm:$0x1]
        %s357 = scalar_lea.vmem [#allocation6], 8
        %v358 = vld [vmem:[%s357] sm:$0x1]
        %v359 = vld [vmem:[%s357 + $0x1] sm:$0x1]
        %v360 = vld [vmem:[%s357 + $0x2] sm:$0x1]
        %v361 = vld [vmem:[%s241] sm:$0x1]
        %v363 = vlaneseq
        %v364 = vshrl.u32 %v363, 7
        %v365 = vsub.s32 0, %v364
        %v366 = vrot.slane %v361, %v365
        %v368 = vadd.f32 %v366, 0.0
        %v369 = vld [vmem:[#allocation2] sm:$0xff]
        %v370 = vld [vmem:[#allocation2 + $0x8] sm:$0xff]
        %v371 = vld [vmem:[#allocation2 + $0x18] sm:$0xff]
        %v372 = vld [vmem:[#allocation2 + $0x20] sm:$0xff]
        %v373 = vld [vmem:[#allocation2 + $0x30] sm:$0xff]
        %v374 = vld [vmem:[#allocation2 + $0x38] sm:$0xff]
        %v375 = vld [vmem:[#allocation2 + $0x48] sm:$0xff]
        %v376 = vld [vmem:[#allocation2 + $0x50] sm:$0xff]
        %v377 = vld [vmem:[#allocation2 + $0x60] sm:$0xff]
        %v378 = vld [vmem:[#allocation2 + $0x68] sm:$0xff]
        %v379 = vld [vmem:[#allocation2 + $0x78] sm:$0xff]
        %v380 = vld [vmem:[#allocation2 + $0x80] sm:$0xff]
        %v381 = vld [vmem:[#allocation2 + $0x90] sm:$0xff]
        %v382 = vld [vmem:[#allocation2 + $0x98] sm:$0xff]
        %v383 = vld [vmem:[#allocation2 + $0xa8] sm:$0xff]
        %v384 = vld [vmem:[#allocation2 + $0xb0] sm:$0xff]
        %v385 = vlaneseq
        %v386 = vshrl.u32 %v385, 7
        %v387 = vsub.s32 0, %v386
        %v388 = vrot.slane %v350, %v387
        %v389 = vmul.f32 %v369, %v388
        %v390 = vmul.f32 %v370, %v388
        %v391 = vmul.f32 %v371, %v388
        %v392 = vmul.f32 %v372, %v388
        %v393 = vmul.f32 %v373, %v388
        %v394 = vmul.f32 %v374, %v388
        %v395 = vmul.f32 %v375, %v388
        %v396 = vmul.f32 %v376, %v388
        %v397 = vmul.f32 %v377, %v388
        %v398 = vmul.f32 %v378, %v388
        %v399 = vmul.f32 %v379, %v388
        %v400 = vmul.f32 %v380, %v388
        %v401 = vmul.f32 %v381, %v388
        %v402 = vmul.f32 %v382, %v388
        %v403 = vmul.f32 %v383, %v388
        %v404 = vmul.f32 %v384, %v388
        %v405 = vadd.f32 %v368, %v389
        %v406 = vadd.f32 %v368, %v390
        %v407 = vadd.f32 %v368, %v391
        %v408 = vadd.f32 %v368, %v392
        %v409 = vadd.f32 %v368, %v393
        %v410 = vadd.f32 %v368, %v394
        %v411 = vadd.f32 %v368, %v395
        %v412 = vadd.f32 %v368, %v396
        %v413 = vadd.f32 %v368, %v397
        %v414 = vadd.f32 %v368, %v398
        %v415 = vadd.f32 %v368, %v399
        %v416 = vadd.f32 %v368, %v400
        %v417 = vadd.f32 %v368, %v401
        %v418 = vadd.f32 %v368, %v402
        %v419 = vadd.f32 %v368, %v403
        %v420 = vadd.f32 %v368, %v404
        %v421 = vld [vmem:[#allocation2 + $0x1] sm:$0xff]
        %v422 = vld [vmem:[#allocation2 + $0x9] sm:$0xff]
        %v423 = vld [vmem:[#allocation2 + $0x19] sm:$0xff]
        %v424 = vld [vmem:[#allocation2 + $0x21] sm:$0xff]
        %v425 = vld [vmem:[#allocation2 + $0x31] sm:$0xff]
        %v426 = vld [vmem:[#allocation2 + $0x39] sm:$0xff]
        %v427 = vld [vmem:[#allocation2 + $0x49] sm:$0xff]
        %v428 = vld [vmem:[#allocation2 + $0x51] sm:$0xff]
        %v429 = vld [vmem:[#allocation2 + $0x61] sm:$0xff]
        %v430 = vld [vmem:[#allocation2 + $0x69] sm:$0xff]
        %v431 = vld [vmem:[#allocation2 + $0x79] sm:$0xff]
        %v432 = vld [vmem:[#allocation2 + $0x81] sm:$0xff]
        %v433 = vld [vmem:[#allocation2 + $0x91] sm:$0xff]
        %v434 = vld [vmem:[#allocation2 + $0x99] sm:$0xff]
        %v435 = vld [vmem:[#allocation2 + $0xa9] sm:$0xff]
        %v436 = vld [vmem:[#allocation2 + $0xb1] sm:$0xff]
        %v437 = vlaneseq
        %v438 = vshrl.u32 %v437, 7
        %v439 = vsub.s32 0, %v438
        %v440 = vrot.slane %v351, %v439
        %v441 = vmul.f32 %v421, %v440
        %v442 = vmul.f32 %v422, %v440
        %v443 = vmul.f32 %v423, %v440
        %v444 = vmul.f32 %v424, %v440
        %v445 = vmul.f32 %v425, %v440
        %v446 = vmul.f32 %v426, %v440
        %v447 = vmul.f32 %v427, %v440
        %v448 = vmul.f32 %v428, %v440
        %v449 = vmul.f32 %v429, %v440
        %v450 = vmul.f32 %v430, %v440
        %v451 = vmul.f32 %v431, %v440
        %v452 = vmul.f32 %v432, %v440
        %v453 = vmul.f32 %v433, %v440
        %v454 = vmul.f32 %v434, %v440
        %v455 = vmul.f32 %v435, %v440
        %v456 = vmul.f32 %v436, %v440
        %v457 = vadd.f32 %v405, %v441
        %v458 = vadd.f32 %v406, %v442
        %v459 = vadd.f32 %v407, %v443
        %v460 = vadd.f32 %v408, %v444
        %v461 = vadd.f32 %v409, %v445
        %v462 = vadd.f32 %v410, %v446
        %v463 = vadd.f32 %v411, %v447
        %v464 = vadd.f32 %v412, %v448
        %v465 = vadd.f32 %v413, %v449
        %v466 = vadd.f32 %v414, %v450
        %v467 = vadd.f32 %v415, %v451
        %v468 = vadd.f32 %v416, %v452
        %v469 = vadd.f32 %v417, %v453
        %v470 = vadd.f32 %v418, %v454
        %v471 = vadd.f32 %v419, %v455
        %v472 = vadd.f32 %v420, %v456
        %v473 = vld [vmem:[#allocation2 + $0x2] sm:$0xff]
        %v474 = vld [vmem:[#allocation2 + $0xa] sm:$0xff]
        %v475 = vld [vmem:[#allocation2 + $0x1a] sm:$0xff]
        %v476 = vld [vmem:[#allocation2 + $0x22] sm:$0xff]
        %v477 = vld [vmem:[#allocation2 + $0x32] sm:$0xff]
        %v478 = vld [vmem:[#allocation2 + $0x3a] sm:$0xff]
        %v479 = vld [vmem:[#allocation2 + $0x4a] sm:$0xff]
        %v480 = vld [vmem:[#allocation2 + $0x52] sm:$0xff]
        %v481 = vld [vmem:[#allocation2 + $0x62] sm:$0xff]
        %v482 = vld [vmem:[#allocation2 + $0x6a] sm:$0xff]
        %v483 = vld [vmem:[#allocation2 + $0x7a] sm:$0xff]
        %v484 = vld [vmem:[#allocation2 + $0x82] sm:$0xff]
        %v485 = vld [vmem:[#allocation2 + $0x92] sm:$0xff]
        %v486 = vld [vmem:[#allocation2 + $0x9a] sm:$0xff]
        %v487 = vld [vmem:[#allocation2 + $0xaa] sm:$0xff]
        %v488 = vld [vmem:[#allocation2 + $0xb2] sm:$0xff]
        %v489 = vlaneseq
        %v490 = vshrl.u32 %v489, 7
        %v491 = vsub.s32 0, %v490
        %v492 = vrot.slane %v352, %v491
        %v493 = vmul.f32 %v473, %v492
        %v494 = vmul.f32 %v474, %v492
        %v495 = vmul.f32 %v475, %v492
        %v496 = vmul.f32 %v476, %v492
        %v497 = vmul.f32 %v477, %v492
        %v498 = vmul.f32 %v478, %v492
        %v499 = vmul.f32 %v479, %v492
        %v500 = vmul.f32 %v480, %v492
        %v501 = vmul.f32 %v481, %v492
        %v502 = vmul.f32 %v482, %v492
        %v503 = vmul.f32 %v483, %v492
        %v504 = vmul.f32 %v484, %v492
        %v505 = vmul.f32 %v485, %v492
        %v506 = vmul.f32 %v486, %v492
        %v507 = vmul.f32 %v487, %v492
        %v508 = vmul.f32 %v488, %v492
        %v509 = vadd.f32 %v457, %v493
        %v510 = vadd.f32 %v458, %v494
        %v511 = vadd.f32 %v459, %v495
        %v512 = vadd.f32 %v460, %v496
        %v513 = vadd.f32 %v461, %v497
        %v514 = vadd.f32 %v462, %v498
        %v515 = vadd.f32 %v463, %v499
        %v516 = vadd.f32 %v464, %v500
        %v517 = vadd.f32 %v465, %v501
        %v518 = vadd.f32 %v466, %v502
        %v519 = vadd.f32 %v467, %v503
        %v520 = vadd.f32 %v468, %v504
        %v521 = vadd.f32 %v469, %v505
        %v522 = vadd.f32 %v470, %v506
        %v523 = vadd.f32 %v471, %v507
        %v524 = vadd.f32 %v472, %v508
        %v525 = vld [vmem:[%s317] sm:$0xff]
        %v526 = vld [vmem:[%s317 + $0x8] sm:$0xff]
        %v527 = vld [vmem:[%s317 + $0x18] sm:$0xff]
        %v528 = vld [vmem:[%s317 + $0x20] sm:$0xff]
        %v529 = vld [vmem:[%s317 + $0x30] sm:$0xff]
        %v530 = vld [vmem:[%s317 + $0x38] sm:$0xff]
        %v531 = vld [vmem:[%s317 + $0x48] sm:$0xff]
        %v532 = vld [vmem:[%s317 + $0x50] sm:$0xff]
        %v533 = vld [vmem:[%s317 + $0x60] sm:$0xff]
        %v534 = vld [vmem:[%s317 + $0x68] sm:$0xff]
        %v535 = vld [vmem:[%s317 + $0x78] sm:$0xff]
        %v536 = vld [vmem:[%s317 + $0x80] sm:$0xff]
        %v537 = vld [vmem:[%s317 + $0x90] sm:$0xff]
        %v538 = vld [vmem:[%s317 + $0x98] sm:$0xff]
        %v539 = vld [vmem:[%s317 + $0xa8] sm:$0xff]
        %v540 = vld [vmem:[%s317 + $0xb0] sm:$0xff]
        %v541 = vlaneseq
        %v542 = vshrl.u32 %v541, 7
        %v543 = vsub.s32 0, %v542
        %v544 = vrot.slane %v354, %v543
        %v545 = vmul.f32 %v525, %v544
        %v546 = vmul.f32 %v526, %v544
        %v547 = vmul.f32 %v527, %v544
        %v548 = vmul.f32 %v528, %v544
        %v549 = vmul.f32 %v529, %v544
        %v550 = vmul.f32 %v530, %v544
        %v551 = vmul.f32 %v531, %v544
        %v552 = vmul.f32 %v532, %v544
        %v553 = vmul.f32 %v533, %v544
        %v554 = vmul.f32 %v534, %v544
        %v555 = vmul.f32 %v535, %v544
        %v556 = vmul.f32 %v536, %v544
        %v557 = vmul.f32 %v537, %v544
        %v558 = vmul.f32 %v538, %v544
        %v559 = vmul.f32 %v539, %v544
        %v560 = vmul.f32 %v540, %v544
        %v561 = vadd.f32 %v509, %v545
        %v562 = vadd.f32 %v510, %v546
        %v563 = vadd.f32 %v511, %v547
        %v564 = vadd.f32 %v512, %v548
        %v565 = vadd.f32 %v513, %v549
        %v566 = vadd.f32 %v514, %v550
        %v567 = vadd.f32 %v515, %v551
        %v568 = vadd.f32 %v516, %v552
        %v569 = vadd.f32 %v517, %v553
        %v570 = vadd.f32 %v518, %v554
        %v571 = vadd.f32 %v519, %v555
        %v572 = vadd.f32 %v520, %v556
        %v573 = vadd.f32 %v521, %v557
        %v574 = vadd.f32 %v522, %v558
        %v575 = vadd.f32 %v523, %v559
        %v576 = vadd.f32 %v524, %v560
        %v577 = vld [vmem:[%s317 + $0x1] sm:$0xff]
        %v578 = vld [vmem:[%s317 + $0x9] sm:$0xff]
        %v579 = vld [vmem:[%s317 + $0x19] sm:$0xff]
        %v580 = vld [vmem:[%s317 + $0x21] sm:$0xff]
        %v581 = vld [vmem:[%s317 + $0x31] sm:$0xff]
        %v582 = vld [vmem:[%s317 + $0x39] sm:$0xff]
        %v583 = vld [vmem:[%s317 + $0x49] sm:$0xff]
        %v584 = vld [vmem:[%s317 + $0x51] sm:$0xff]
        %v585 = vld [vmem:[%s317 + $0x61] sm:$0xff]
        %v586 = vld [vmem:[%s317 + $0x69] sm:$0xff]
        %v587 = vld [vmem:[%s317 + $0x79] sm:$0xff]
        %v588 = vld [vmem:[%s317 + $0x81] sm:$0xff]
        %v589 = vld [vmem:[%s317 + $0x91] sm:$0xff]
        %v590 = vld [vmem:[%s317 + $0x99] sm:$0xff]
        %v591 = vld [vmem:[%s317 + $0xa9] sm:$0xff]
        %v592 = vld [vmem:[%s317 + $0xb1] sm:$0xff]
        %v593 = vlaneseq
        %v594 = vshrl.u32 %v593, 7
        %v595 = vsub.s32 0, %v594
        %v596 = vrot.slane %v355, %v595
        %v597 = vmul.f32 %v577, %v596
        %v598 = vmul.f32 %v578, %v596
        %v599 = vmul.f32 %v579, %v596
        %v600 = vmul.f32 %v580, %v596
        %v601 = vmul.f32 %v581, %v596
        %v602 = vmul.f32 %v582, %v596
        %v603 = vmul.f32 %v583, %v596
        %v604 = vmul.f32 %v584, %v596
        %v605 = vmul.f32 %v585, %v596
        %v606 = vmul.f32 %v586, %v596
        %v607 = vmul.f32 %v587, %v596
        %v608 = vmul.f32 %v588, %v596
        %v609 = vmul.f32 %v589, %v596
        %v610 = vmul.f32 %v590, %v596
        %v611 = vmul.f32 %v591, %v596
        %v612 = vmul.f32 %v592, %v596
        %v613 = vadd.f32 %v561, %v597
        %v614 = vadd.f32 %v562, %v598
        %v615 = vadd.f32 %v563, %v599
        %v616 = vadd.f32 %v564, %v600
        %v617 = vadd.f32 %v565, %v601
        %v618 = vadd.f32 %v566, %v602
        %v619 = vadd.f32 %v567, %v603
        %v620 = vadd.f32 %v568, %v604
        %v621 = vadd.f32 %v569, %v605
        %v622 = vadd.f32 %v570, %v606
        %v623 = vadd.f32 %v571, %v607
        %v624 = vadd.f32 %v572, %v608
        %v625 = vadd.f32 %v573, %v609
        %v626 = vadd.f32 %v574, %v610
        %v627 = vadd.f32 %v575, %v611
        %v628 = vadd.f32 %v576, %v612
        %v629 = vld [vmem:[%s317 + $0x2] sm:$0xff]
        %v630 = vld [vmem:[%s317 + $0xa] sm:$0xff]
        %v631 = vld [vmem:[%s317 + $0x1a] sm:$0xff]
        %v632 = vld [vmem:[%s317 + $0x22] sm:$0xff]
        %v633 = vld [vmem:[%s317 + $0x32] sm:$0xff]
        %v634 = vld [vmem:[%s317 + $0x3a] sm:$0xff]
        %v635 = vld [vmem:[%s317 + $0x4a] sm:$0xff]
        %v636 = vld [vmem:[%s317 + $0x52] sm:$0xff]
        %v637 = vld [vmem:[%s317 + $0x62] sm:$0xff]
        %v638 = vld [vmem:[%s317 + $0x6a] sm:$0xff]
        %v639 = vld [vmem:[%s317 + $0x7a] sm:$0xff]
        %v640 = vld [vmem:[%s317 + $0x82] sm:$0xff]
        %v641 = vld [vmem:[%s317 + $0x92] sm:$0xff]
        %v642 = vld [vmem:[%s317 + $0x9a] sm:$0xff]
        %v643 = vld [vmem:[%s317 + $0xaa] sm:$0xff]
        %v644 = vld [vmem:[%s317 + $0xb2] sm:$0xff]
        %v645 = vlaneseq
        %v646 = vshrl.u32 %v645, 7
        %v647 = vsub.s32 0, %v646
        %v648 = vrot.slane %v356, %v647
        %v649 = vmul.f32 %v629, %v648
        %v650 = vmul.f32 %v630, %v648
        %v651 = vmul.f32 %v631, %v648
        %v652 = vmul.f32 %v632, %v648
        %v653 = vmul.f32 %v633, %v648
        %v654 = vmul.f32 %v634, %v648
        %v655 = vmul.f32 %v635, %v648
        %v656 = vmul.f32 %v636, %v648
        %v657 = vmul.f32 %v637, %v648
        %v658 = vmul.f32 %v638, %v648
        %v659 = vmul.f32 %v639, %v648
        %v660 = vmul.f32 %v640, %v648
        %v661 = vmul.f32 %v641, %v648
        %v662 = vmul.f32 %v642, %v648
        %v663 = vmul.f32 %v643, %v648
        %v664 = vmul.f32 %v644, %v648
        %v665 = vadd.f32 %v613, %v649
        %v666 = vadd.f32 %v614, %v650
        %v667 = vadd.f32 %v615, %v651
        %v668 = vadd.f32 %v616, %v652
        %v669 = vadd.f32 %v617, %v653
        %v670 = vadd.f32 %v618, %v654
        %v671 = vadd.f32 %v619, %v655
        %v672 = vadd.f32 %v620, %v656
        %v673 = vadd.f32 %v621, %v657
        %v674 = vadd.f32 %v622, %v658
        %v675 = vadd.f32 %v623, %v659
        %v676 = vadd.f32 %v624, %v660
        %v677 = vadd.f32 %v625, %v661
        %v678 = vadd.f32 %v626, %v662
        %v679 = vadd.f32 %v627, %v663
        %v680 = vadd.f32 %v628, %v664
        %s681 = scalar_lea.vmem [#allocation2], 48
        %v682 = vld [vmem:[%s681] sm:$0xff]
        %v683 = vld [vmem:[%s681 + $0x8] sm:$0xff]
        %v684 = vld [vmem:[%s681 + $0x18] sm:$0xff]
        %v685 = vld [vmem:[%s681 + $0x20] sm:$0xff]
        %v686 = vld [vmem:[%s681 + $0x30] sm:$0xff]
        %v687 = vld [vmem:[%s681 + $0x38] sm:$0xff]
        %v688 = vld [vmem:[%s681 + $0x48] sm:$0xff]
        %v689 = vld [vmem:[%s681 + $0x50] sm:$0xff]
        %v690 = vld [vmem:[%s681 + $0x60] sm:$0xff]
        %v691 = vld [vmem:[%s681 + $0x68] sm:$0xff]
        %v692 = vld [vmem:[%s681 + $0x78] sm:$0xff]
        %v693 = vld [vmem:[%s681 + $0x80] sm:$0xff]
        %v694 = vld [vmem:[%s681 + $0x90] sm:$0xff]
        %v695 = vld [vmem:[%s681 + $0x98] sm:$0xff]
        %v696 = vld [vmem:[%s681 + $0xa8] sm:$0xff]
        %v697 = vld [vmem:[%s681 + $0xb0] sm:$0xff]
        %v698 = vlaneseq
        %v699 = vshrl.u32 %v698, 7
        %v700 = vsub.s32 0, %v699
        %v701 = vrot.slane %v358, %v700
        %v702 = vmul.f32 %v682, %v701
        %v703 = vmul.f32 %v683, %v701
        %v704 = vmul.f32 %v684, %v701
        %v705 = vmul.f32 %v685, %v701
        %v706 = vmul.f32 %v686, %v701
        %v707 = vmul.f32 %v687, %v701
        %v708 = vmul.f32 %v688, %v701
        %v709 = vmul.f32 %v689, %v701
        %v710 = vmul.f32 %v690, %v701
        %v711 = vmul.f32 %v691, %v701
        %v712 = vmul.f32 %v692, %v701
        %v713 = vmul.f32 %v693, %v701
        %v714 = vmul.f32 %v694, %v701
        %v715 = vmul.f32 %v695, %v701
        %v716 = vmul.f32 %v696, %v701
        %v717 = vmul.f32 %v697, %v701
        %v718 = vadd.f32 %v665, %v702
        %v719 = vadd.f32 %v666, %v703
        %v720 = vadd.f32 %v667, %v704
        %v721 = vadd.f32 %v668, %v705
        %v722 = vadd.f32 %v669, %v706
        %v723 = vadd.f32 %v670, %v707
        %v724 = vadd.f32 %v671, %v708
        %v725 = vadd.f32 %v672, %v709
        %v726 = vadd.f32 %v673, %v710
        %v727 = vadd.f32 %v674, %v711
        %v728 = vadd.f32 %v675, %v712
        %v729 = vadd.f32 %v676, %v713
        %v730 = vadd.f32 %v677, %v714
        %v731 = vadd.f32 %v678, %v715
        %v732 = vadd.f32 %v679, %v716
        %v733 = vadd.f32 %v680, %v717
        %v734 = vld [vmem:[%s681 + $0x1] sm:$0xff]
        %v735 = vld [vmem:[%s681 + $0x9] sm:$0xff]
        %v736 = vld [vmem:[%s681 + $0x19] sm:$0xff]
        %v737 = vld [vmem:[%s681 + $0x21] sm:$0xff]
        %v738 = vld [vmem:[%s681 + $0x31] sm:$0xff]
        %v739 = vld [vmem:[%s681 + $0x39] sm:$0xff]
        %v740 = vld [vmem:[%s681 + $0x49] sm:$0xff]
        %v741 = vld [vmem:[%s681 + $0x51] sm:$0xff]
        %v742 = vld [vmem:[%s681 + $0x61] sm:$0xff]
        %v743 = vld [vmem:[%s681 + $0x69] sm:$0xff]
        %v744 = vld [vmem:[%s681 + $0x79] sm:$0xff]
        %v745 = vld [vmem:[%s681 + $0x81] sm:$0xff]
        %v746 = vld [vmem:[%s681 + $0x91] sm:$0xff]
        %v747 = vld [vmem:[%s681 + $0x99] sm:$0xff]
        %v748 = vld [vmem:[%s681 + $0xa9] sm:$0xff]
        %v749 = vld [vmem:[%s681 + $0xb1] sm:$0xff]
        %v750 = vlaneseq
        %v751 = vshrl.u32 %v750, 7
        %v752 = vsub.s32 0, %v751
        %v753 = vrot.slane %v359, %v752
        %v754 = vmul.f32 %v734, %v753
        %v755 = vmul.f32 %v735, %v753
        %v756 = vmul.f32 %v736, %v753
        %v757 = vmul.f32 %v737, %v753
        %v758 = vmul.f32 %v738, %v753
        %v759 = vmul.f32 %v739, %v753
        %v760 = vmul.f32 %v740, %v753
        %v761 = vmul.f32 %v741, %v753
        %v762 = vmul.f32 %v742, %v753
        %v763 = vmul.f32 %v743, %v753
        %v764 = vmul.f32 %v744, %v753
        %v765 = vmul.f32 %v745, %v753
        %v766 = vmul.f32 %v746, %v753
        %v767 = vmul.f32 %v747, %v753
        %v768 = vmul.f32 %v748, %v753
        %v769 = vmul.f32 %v749, %v753
        %v770 = vadd.f32 %v718, %v754
        %v771 = vadd.f32 %v719, %v755
        %v772 = vadd.f32 %v720, %v756
        %v773 = vadd.f32 %v721, %v757
        %v774 = vadd.f32 %v722, %v758
        %v775 = vadd.f32 %v723, %v759
        %v776 = vadd.f32 %v724, %v760
        %v777 = vadd.f32 %v725, %v761
        %v778 = vadd.f32 %v726, %v762
        %v779 = vadd.f32 %v727, %v763
        %v780 = vadd.f32 %v728, %v764
        %v781 = vadd.f32 %v729, %v765
        %v782 = vadd.f32 %v730, %v766
        %v783 = vadd.f32 %v731, %v767
        %v784 = vadd.f32 %v732, %v768
        %v785 = vadd.f32 %v733, %v769
        %v786 = vld [vmem:[%s681 + $0x2] sm:$0xff]
        %v787 = vld [vmem:[%s681 + $0xa] sm:$0xff]
        %v788 = vld [vmem:[%s681 + $0x1a] sm:$0xff]
        %v789 = vld [vmem:[%s681 + $0x22] sm:$0xff]
        %v790 = vld [vmem:[%s681 + $0x32] sm:$0xff]
        %v791 = vld [vmem:[%s681 + $0x3a] sm:$0xff]
        %v792 = vld [vmem:[%s681 + $0x4a] sm:$0xff]
        %v793 = vld [vmem:[%s681 + $0x52] sm:$0xff]
        %v794 = vld [vmem:[%s681 + $0x62] sm:$0xff]
        %v795 = vld [vmem:[%s681 + $0x6a] sm:$0xff]
        %v796 = vld [vmem:[%s681 + $0x7a] sm:$0xff]
        %v797 = vld [vmem:[%s681 + $0x82] sm:$0xff]
        %v798 = vld [vmem:[%s681 + $0x92] sm:$0xff]
        %v799 = vld [vmem:[%s681 + $0x9a] sm:$0xff]
        %v800 = vld [vmem:[%s681 + $0xaa] sm:$0xff]
        %v801 = vld [vmem:[%s681 + $0xb2] sm:$0xff]
        %v802 = vlaneseq
        %v803 = vshrl.u32 %v802, 7
        %v804 = vsub.s32 0, %v803
        %v805 = vrot.slane %v360, %v804
        %v806 = vmul.f32 %v786, %v805
        %v807 = vmul.f32 %v787, %v805
        %v808 = vmul.f32 %v788, %v805
        %v809 = vmul.f32 %v789, %v805
        %v810 = vmul.f32 %v790, %v805
        %v811 = vmul.f32 %v791, %v805
        %v812 = vmul.f32 %v792, %v805
        %v813 = vmul.f32 %v793, %v805
        %v814 = vmul.f32 %v794, %v805
        %v815 = vmul.f32 %v795, %v805
        %v816 = vmul.f32 %v796, %v805
        %v817 = vmul.f32 %v797, %v805
        %v818 = vmul.f32 %v798, %v805
        %v819 = vmul.f32 %v799, %v805
        %v820 = vmul.f32 %v800, %v805
        %v821 = vmul.f32 %v801, %v805
        %v822 = vadd.f32 %v770, %v806
        %v823 = vadd.f32 %v771, %v807
        %v824 = vadd.f32 %v772, %v808
        %v825 = vadd.f32 %v773, %v809
        %v826 = vadd.f32 %v774, %v810
        %v827 = vadd.f32 %v775, %v811
        %v828 = vadd.f32 %v776, %v812
        %v829 = vadd.f32 %v777, %v813
        %v830 = vadd.f32 %v778, %v814
        %v831 = vadd.f32 %v779, %v815
        %v832 = vadd.f32 %v780, %v816
        %v833 = vadd.f32 %v781, %v817
        %v834 = vadd.f32 %v782, %v818
        %v835 = vadd.f32 %v783, %v819
        %v836 = vadd.f32 %v784, %v820
        %v837 = vadd.f32 %v785, %v821
        %838 = vst [vmem:[%s238] sm:$0xff] %v822
        %839 = vst [vmem:[%s238 + $0x8] sm:$0xff] %v823
        %840 = vst [vmem:[%s238 + $0x10] sm:$0xff] %v824
        %841 = vst [vmem:[%s238 + $0x18] sm:$0xff] %v825
        %842 = vst [vmem:[%s238 + $0x20] sm:$0xff] %v826
        %843 = vst [vmem:[%s238 + $0x28] sm:$0xff] %v827
        %844 = vst [vmem:[%s238 + $0x30] sm:$0xff] %v828
        %845 = vst [vmem:[%s238 + $0x38] sm:$0xff] %v829
        %846 = vst [vmem:[%s238 + $0x40] sm:$0xff] %v830
        %847 = vst [vmem:[%s238 + $0x48] sm:$0xff] %v831
        %848 = vst [vmem:[%s238 + $0x50] sm:$0xff] %v832
        %849 = vst [vmem:[%s238 + $0x58] sm:$0xff] %v833
        %850 = vst [vmem:[%s238 + $0x60] sm:$0xff] %v834
        %851 = vst [vmem:[%s238 + $0x68] sm:$0xff] %v835
        %852 = vst [vmem:[%s238 + $0x70] sm:$0xff] %v836
        %853 = vst [vmem:[%s238 + $0x78] sm:$0xff] %v837
        %s854 = scalar_lea.vmem [#allocation2], 192
        %v855 = vld [vmem:[%s854] sm:$0xff]
        %v856 = vld [vmem:[%s854 + $0x8] sm:$0xff]
        %v857 = vld [vmem:[%s854 + $0x18] sm:$0xff]
        %v858 = vld [vmem:[%s854 + $0x20] sm:$0xff]
        %v859 = vld [vmem:[%s854 + $0x30] sm:$0xff]
        %v860 = vld [vmem:[%s854 + $0x38] sm:$0xff]
        %v861 = vld [vmem:[%s854 + $0x48] sm:$0xff]
        %v862 = vld [vmem:[%s854 + $0x50] sm:$0xff]
        %v863 = vld [vmem:[%s854 + $0x60] sm:$0xff]
        %v864 = vld [vmem:[%s854 + $0x68] sm:$0xff]
        %v865 = vld [vmem:[%s854 + $0x78] sm:$0xff]
        %v866 = vld [vmem:[%s854 + $0x80] sm:$0xff]
        %v867 = vld [vmem:[%s854 + $0x90] sm:$0xff]
        %v868 = vld [vmem:[%s854 + $0x98] sm:$0xff]
        %v869 = vld [vmem:[%s854 + $0xa8] sm:$0xff]
        %v870 = vld [vmem:[%s854 + $0xb0] sm:$0xff]
        %v871 = vmul.f32 %v855, %v388
        %v872 = vmul.f32 %v856, %v388
        %v873 = vmul.f32 %v857, %v388
        %v874 = vmul.f32 %v858, %v388
        %v875 = vmul.f32 %v859, %v388
        %v876 = vmul.f32 %v860, %v388
        %v877 = vmul.f32 %v861, %v388
        %v878 = vmul.f32 %v862, %v388
        %v879 = vmul.f32 %v863, %v388
        %v880 = vmul.f32 %v864, %v388
        %v881 = vmul.f32 %v865, %v388
        %v882 = vmul.f32 %v866, %v388
        %v883 = vmul.f32 %v867, %v388
        %v884 = vmul.f32 %v868, %v388
        %v885 = vmul.f32 %v869, %v388
        %v886 = vmul.f32 %v870, %v388
        %v887 = vadd.f32 %v368, %v871
        %v888 = vadd.f32 %v368, %v872
        %v889 = vadd.f32 %v368, %v873
        %v890 = vadd.f32 %v368, %v874
        %v891 = vadd.f32 %v368, %v875
        %v892 = vadd.f32 %v368, %v876
        %v893 = vadd.f32 %v368, %v877
        %v894 = vadd.f32 %v368, %v878
        %v895 = vadd.f32 %v368, %v879
        %v896 = vadd.f32 %v368, %v880
        %v897 = vadd.f32 %v368, %v881
        %v898 = vadd.f32 %v368, %v882
        %v899 = vadd.f32 %v368, %v883
        %v900 = vadd.f32 %v368, %v884
        %v901 = vadd.f32 %v368, %v885
        %v902 = vadd.f32 %v368, %v886
        %v903 = vld [vmem:[%s854 + $0x1] sm:$0xff]
        %v904 = vld [vmem:[%s854 + $0x9] sm:$0xff]
        %v905 = vld [vmem:[%s854 + $0x19] sm:$0xff]
        %v906 = vld [vmem:[%s854 + $0x21] sm:$0xff]
        %v907 = vld [vmem:[%s854 + $0x31] sm:$0xff]
        %v908 = vld [vmem:[%s854 + $0x39] sm:$0xff]
        %v909 = vld [vmem:[%s854 + $0x49] sm:$0xff]
        %v910 = vld [vmem:[%s854 + $0x51] sm:$0xff]
        %v911 = vld [vmem:[%s854 + $0x61] sm:$0xff]
        %v912 = vld [vmem:[%s854 + $0x69] sm:$0xff]
        %v913 = vld [vmem:[%s854 + $0x79] sm:$0xff]
        %v914 = vld [vmem:[%s854 + $0x81] sm:$0xff]
        %v915 = vld [vmem:[%s854 + $0x91] sm:$0xff]
        %v916 = vld [vmem:[%s854 + $0x99] sm:$0xff]
        %v917 = vld [vmem:[%s854 + $0xa9] sm:$0xff]
        %v918 = vld [vmem:[%s854 + $0xb1] sm:$0xff]
        %v919 = vmul.f32 %v903, %v440
        %v920 = vmul.f32 %v904, %v440
        %v921 = vmul.f32 %v905, %v440
        %v922 = vmul.f32 %v906, %v440
        %v923 = vmul.f32 %v907, %v440
        %v924 = vmul.f32 %v908, %v440
        %v925 = vmul.f32 %v909, %v440
        %v926 = vmul.f32 %v910, %v440
        %v927 = vmul.f32 %v911, %v440
        %v928 = vmul.f32 %v912, %v440
        %v929 = vmul.f32 %v913, %v440
        %v930 = vmul.f32 %v914, %v440
        %v931 = vmul.f32 %v915, %v440
        %v932 = vmul.f32 %v916, %v440
        %v933 = vmul.f32 %v917, %v440
        %v934 = vmul.f32 %v918, %v440
        %v935 = vadd.f32 %v887, %v919
        %v936 = vadd.f32 %v888, %v920
        %v937 = vadd.f32 %v889, %v921
        %v938 = vadd.f32 %v890, %v922
        %v939 = vadd.f32 %v891, %v923
        %v940 = vadd.f32 %v892, %v924
        %v941 = vadd.f32 %v893, %v925
        %v942 = vadd.f32 %v894, %v926
        %v943 = vadd.f32 %v895, %v927
        %v944 = vadd.f32 %v896, %v928
        %v945 = vadd.f32 %v897, %v929
        %v946 = vadd.f32 %v898, %v930
        %v947 = vadd.f32 %v899, %v931
        %v948 = vadd.f32 %v900, %v932
        %v949 = vadd.f32 %v901, %v933
        %v950 = vadd.f32 %v902, %v934
        %v951 = vld [vmem:[%s854 + $0x2] sm:$0xff]
        %v952 = vld [vmem:[%s854 + $0xa] sm:$0xff]
        %v953 = vld [vmem:[%s854 + $0x1a] sm:$0xff]
        %v954 = vld [vmem:[%s854 + $0x22] sm:$0xff]
        %v955 = vld [vmem:[%s854 + $0x32] sm:$0xff]
        %v956 = vld [vmem:[%s854 + $0x3a] sm:$0xff]
        %v957 = vld [vmem:[%s854 + $0x4a] sm:$0xff]
        %v958 = vld [vmem:[%s854 + $0x52] sm:$0xff]
        %v959 = vld [vmem:[%s854 + $0x62] sm:$0xff]
        %v960 = vld [vmem:[%s854 + $0x6a] sm:$0xff]
        %v961 = vld [vmem:[%s854 + $0x7a] sm:$0xff]
        %v962 = vld [vmem:[%s854 + $0x82] sm:$0xff]
        %v963 = vld [vmem:[%s854 + $0x92] sm:$0xff]
        %v964 = vld [vmem:[%s854 + $0x9a] sm:$0xff]
        %v965 = vld [vmem:[%s854 + $0xaa] sm:$0xff]
        %v966 = vld [vmem:[%s854 + $0xb2] sm:$0xff]
        %v967 = vmul.f32 %v951, %v492
        %v968 = vmul.f32 %v952, %v492
        %v969 = vmul.f32 %v953, %v492
        %v970 = vmul.f32 %v954, %v492
        %v971 = vmul.f32 %v955, %v492
        %v972 = vmul.f32 %v956, %v492
        %v973 = vmul.f32 %v957, %v492
        %v974 = vmul.f32 %v958, %v492
        %v975 = vmul.f32 %v959, %v492
        %v976 = vmul.f32 %v960, %v492
        %v977 = vmul.f32 %v961, %v492
        %v978 = vmul.f32 %v962, %v492
        %v979 = vmul.f32 %v963, %v492
        %v980 = vmul.f32 %v964, %v492
        %v981 = vmul.f32 %v965, %v492
        %v982 = vmul.f32 %v966, %v492
        %v983 = vadd.f32 %v935, %v967
        %v984 = vadd.f32 %v936, %v968
        %v985 = vadd.f32 %v937, %v969
        %v986 = vadd.f32 %v938, %v970
        %v987 = vadd.f32 %v939, %v971
        %v988 = vadd.f32 %v940, %v972
        %v989 = vadd.f32 %v941, %v973
        %v990 = vadd.f32 %v942, %v974
        %v991 = vadd.f32 %v943, %v975
        %v992 = vadd.f32 %v944, %v976
        %v993 = vadd.f32 %v945, %v977
        %v994 = vadd.f32 %v946, %v978
        %v995 = vadd.f32 %v947, %v979
        %v996 = vadd.f32 %v948, %v980
        %v997 = vadd.f32 %v949, %v981
        %v998 = vadd.f32 %v950, %v982
        %s999 = scalar_lea.vmem [#allocation2], 216
        %v1000 = vld [vmem:[%s999] sm:$0xff]
        %v1001 = vld [vmem:[%s999 + $0x8] sm:$0xff]
        %v1002 = vld [vmem:[%s999 + $0x18] sm:$0xff]
        %v1003 = vld [vmem:[%s999 + $0x20] sm:$0xff]
        %v1004 = vld [vmem:[%s999 + $0x30] sm:$0xff]
        %v1005 = vld [vmem:[%s999 + $0x38] sm:$0xff]
        %v1006 = vld [vmem:[%s999 + $0x48] sm:$0xff]
        %v1007 = vld [vmem:[%s999 + $0x50] sm:$0xff]
        %v1008 = vld [vmem:[%s999 + $0x60] sm:$0xff]
        %v1009 = vld [vmem:[%s999 + $0x68] sm:$0xff]
        %v1010 = vld [vmem:[%s999 + $0x78] sm:$0xff]
        %v1011 = vld [vmem:[%s999 + $0x80] sm:$0xff]
        %v1012 = vld [vmem:[%s999 + $0x90] sm:$0xff]
        %v1013 = vld [vmem:[%s999 + $0x98] sm:$0xff]
        %v1014 = vld [vmem:[%s999 + $0xa8] sm:$0xff]
        %v1015 = vld [vmem:[%s999 + $0xb0] sm:$0xff]
        %v1016 = vmul.f32 %v1000, %v544
        %v1017 = vmul.f32 %v1001, %v544
        %v1018 = vmul.f32 %v1002, %v544
        %v1019 = vmul.f32 %v1003, %v544
        %v1020 = vmul.f32 %v1004, %v544
        %v1021 = vmul.f32 %v1005, %v544
        %v1022 = vmul.f32 %v1006, %v544
        %v1023 = vmul.f32 %v1007, %v544
        %v1024 = vmul.f32 %v1008, %v544
        %v1025 = vmul.f32 %v1009, %v544
        %v1026 = vmul.f32 %v1010, %v544
        %v1027 = vmul.f32 %v1011, %v544
        %v1028 = vmul.f32 %v1012, %v544
        %v1029 = vmul.f32 %v1013, %v544
        %v1030 = vmul.f32 %v1014, %v544
        %v1031 = vmul.f32 %v1015, %v544
        %v1032 = vadd.f32 %v983, %v1016
        %v1033 = vadd.f32 %v984, %v1017
        %v1034 = vadd.f32 %v985, %v1018
        %v1035 = vadd.f32 %v986, %v1019
        %v1036 = vadd.f32 %v987, %v1020
        %v1037 = vadd.f32 %v988, %v1021
        %v1038 = vadd.f32 %v989, %v1022
        %v1039 = vadd.f32 %v990, %v1023
        %v1040 = vadd.f32 %v991, %v1024
        %v1041 = vadd.f32 %v992, %v1025
        %v1042 = vadd.f32 %v993, %v1026
        %v1043 = vadd.f32 %v994, %v1027
        %v1044 = vadd.f32 %v995, %v1028
        %v1045 = vadd.f32 %v996, %v1029
        %v1046 = vadd.f32 %v997, %v1030
        %v1047 = vadd.f32 %v998, %v1031
        %v1048 = vld [vmem:[%s999 + $0x1] sm:$0xff]
        %v1049 = vld [vmem:[%s999 + $0x9] sm:$0xff]
        %v1050 = vld [vmem:[%s999 + $0x19] sm:$0xff]
        %v1051 = vld [vmem:[%s999 + $0x21] sm:$0xff]
        %v1052 = vld [vmem:[%s999 + $0x31] sm:$0xff]
        %v1053 = vld [vmem:[%s999 + $0x39] sm:$0xff]
        %v1054 = vld [vmem:[%s999 + $0x49] sm:$0xff]
        %v1055 = vld [vmem:[%s999 + $0x51] sm:$0xff]
        %v1056 = vld [vmem:[%s999 + $0x61] sm:$0xff]
        %v1057 = vld [vmem:[%s999 + $0x69] sm:$0xff]
        %v1058 = vld [vmem:[%s999 + $0x79] sm:$0xff]
        %v1059 = vld [vmem:[%s999 + $0x81] sm:$0xff]
        %v1060 = vld [vmem:[%s999 + $0x91] sm:$0xff]
        %v1061 = vld [vmem:[%s999 + $0x99] sm:$0xff]
        %v1062 = vld [vmem:[%s999 + $0xa9] sm:$0xff]
        %v1063 = vld [vmem:[%s999 + $0xb1] sm:$0xff]
        %v1064 = vmul.f32 %v1048, %v596
        %v1065 = vmul.f32 %v1049, %v596
        %v1066 = vmul.f32 %v1050, %v596
        %v1067 = vmul.f32 %v1051, %v596
        %v1068 = vmul.f32 %v1052, %v596
        %v1069 = vmul.f32 %v1053, %v596
        %v1070 = vmul.f32 %v1054, %v596
        %v1071 = vmul.f32 %v1055, %v596
        %v1072 = vmul.f32 %v1056, %v596
        %v1073 = vmul.f32 %v1057, %v596
        %v1074 = vmul.f32 %v1058, %v596
        %v1075 = vmul.f32 %v1059, %v596
        %v1076 = vmul.f32 %v1060, %v596
        %v1077 = vmul.f32 %v1061, %v596
        %v1078 = vmul.f32 %v1062, %v596
        %v1079 = vmul.f32 %v1063, %v596
        %v1080 = vadd.f32 %v1032, %v1064
        %v1081 = vadd.f32 %v1033, %v1065
        %v1082 = vadd.f32 %v1034, %v1066
        %v1083 = vadd.f32 %v1035, %v1067
        %v1084 = vadd.f32 %v1036, %v1068
        %v1085 = vadd.f32 %v1037, %v1069
        %v1086 = vadd.f32 %v1038, %v1070
        %v1087 = vadd.f32 %v1039, %v1071
        %v1088 = vadd.f32 %v1040, %v1072
        %v1089 = vadd.f32 %v1041, %v1073
        %v1090 = vadd.f32 %v1042, %v1074
        %v1091 = vadd.f32 %v1043, %v1075
        %v1092 = vadd.f32 %v1044, %v1076
        %v1093 = vadd.f32 %v1045, %v1077
        %v1094 = vadd.f32 %v1046, %v1078
        %v1095 = vadd.f32 %v1047, %v1079
        %v1096 = vld [vmem:[%s999 + $0x2] sm:$0xff]
        %v1097 = vld [vmem:[%s999 + $0xa] sm:$0xff]
        %v1098 = vld [vmem:[%s999 + $0x1a] sm:$0xff]
        %v1099 = vld [vmem:[%s999 + $0x22] sm:$0xff]
        %v1100 = vld [vmem:[%s999 + $0x32] sm:$0xff]
        %v1101 = vld [vmem:[%s999 + $0x3a] sm:$0xff]
        %v1102 = vld [vmem:[%s999 + $0x4a] sm:$0xff]
        %v1103 = vld [vmem:[%s999 + $0x52] sm:$0xff]
        %v1104 = vld [vmem:[%s999 + $0x62] sm:$0xff]
        %v1105 = vld [vmem:[%s999 + $0x6a] sm:$0xff]
        %v1106 = vld [vmem:[%s999 + $0x7a] sm:$0xff]
        %v1107 = vld [vmem:[%s999 + $0x82] sm:$0xff]
        %v1108 = vld [vmem:[%s999 + $0x92] sm:$0xff]
        %v1109 = vld [vmem:[%s999 + $0x9a] sm:$0xff]
        %v1110 = vld [vmem:[%s999 + $0xaa] sm:$0xff]
        %v1111 = vld [vmem:[%s999 + $0xb2] sm:$0xff]
        %v1112 = vmul.f32 %v1096, %v648
        %v1113 = vmul.f32 %v1097, %v648
        %v1114 = vmul.f32 %v1098, %v648
        %v1115 = vmul.f32 %v1099, %v648
        %v1116 = vmul.f32 %v1100, %v648
        %v1117 = vmul.f32 %v1101, %v648
        %v1118 = vmul.f32 %v1102, %v648
        %v1119 = vmul.f32 %v1103, %v648
        %v1120 = vmul.f32 %v1104, %v648
        %v1121 = vmul.f32 %v1105, %v648
        %v1122 = vmul.f32 %v1106, %v648
        %v1123 = vmul.f32 %v1107, %v648
        %v1124 = vmul.f32 %v1108, %v648
        %v1125 = vmul.f32 %v1109, %v648
        %v1126 = vmul.f32 %v1110, %v648
        %v1127 = vmul.f32 %v1111, %v648
        %v1128 = vadd.f32 %v1080, %v1112
        %v1129 = vadd.f32 %v1081, %v1113
        %v1130 = vadd.f32 %v1082, %v1114
        %v1131 = vadd.f32 %v1083, %v1115
        %v1132 = vadd.f32 %v1084, %v1116
        %v1133 = vadd.f32 %v1085, %v1117
        %v1134 = vadd.f32 %v1086, %v1118
        %v1135 = vadd.f32 %v1087, %v1119
        %v1136 = vadd.f32 %v1088, %v1120
        %v1137 = vadd.f32 %v1089, %v1121
        %v1138 = vadd.f32 %v1090, %v1122
        %v1139 = vadd.f32 %v1091, %v1123
        %v1140 = vadd.f32 %v1092, %v1124
        %v1141 = vadd.f32 %v1093, %v1125
        %v1142 = vadd.f32 %v1094, %v1126
        %v1143 = vadd.f32 %v1095, %v1127
        %s1144 = scalar_lea.vmem [#allocation2], 240
        %v1145 = vld [vmem:[%s1144] sm:$0xff]
        %v1146 = vld [vmem:[%s1144 + $0x8] sm:$0xff]
        %v1147 = vld [vmem:[%s1144 + $0x18] sm:$0xff]
        %v1148 = vld [vmem:[%s1144 + $0x20] sm:$0xff]
        %v1149 = vld [vmem:[%s1144 + $0x30] sm:$0xff]
        %v1150 = vld [vmem:[%s1144 + $0x38] sm:$0xff]
        %v1151 = vld [vmem:[%s1144 + $0x48] sm:$0xff]
        %v1152 = vld [vmem:[%s1144 + $0x50] sm:$0xff]
        %v1153 = vld [vmem:[%s1144 + $0x60] sm:$0xff]
        %v1154 = vld [vmem:[%s1144 + $0x68] sm:$0xff]
        %v1155 = vld [vmem:[%s1144 + $0x78] sm:$0xff]
        %v1156 = vld [vmem:[%s1144 + $0x80] sm:$0xff]
        %v1157 = vld [vmem:[%s1144 + $0x90] sm:$0xff]
        %v1158 = vld [vmem:[%s1144 + $0x98] sm:$0xff]
        %v1159 = vld [vmem:[%s1144 + $0xa8] sm:$0xff]
        %v1160 = vld [vmem:[%s1144 + $0xb0] sm:$0xff]
        %v1161 = vmul.f32 %v1145, %v701
        %v1162 = vmul.f32 %v1146, %v701
        %v1163 = vmul.f32 %v1147, %v701
        %v1164 = vmul.f32 %v1148, %v701
        %v1165 = vmul.f32 %v1149, %v701
        %v1166 = vmul.f32 %v1150, %v701
        %v1167 = vmul.f32 %v1151, %v701
        %v1168 = vmul.f32 %v1152, %v701
        %v1169 = vmul.f32 %v1153, %v701
        %v1170 = vmul.f32 %v1154, %v701
        %v1171 = vmul.f32 %v1155, %v701
        %v1172 = vmul.f32 %v1156, %v701
        %v1173 = vmul.f32 %v1157, %v701
        %v1174 = vmul.f32 %v1158, %v701
        %v1175 = vmul.f32 %v1159, %v701
        %v1176 = vmul.f32 %v1160, %v701
        %v1177 = vadd.f32 %v1128, %v1161
        %v1178 = vadd.f32 %v1129, %v1162
        %v1179 = vadd.f32 %v1130, %v1163
        %v1180 = vadd.f32 %v1131, %v1164
        %v1181 = vadd.f32 %v1132, %v1165
        %v1182 = vadd.f32 %v1133, %v1166
        %v1183 = vadd.f32 %v1134, %v1167
        %v1184 = vadd.f32 %v1135, %v1168
        %v1185 = vadd.f32 %v1136, %v1169
        %v1186 = vadd.f32 %v1137, %v1170
        %v1187 = vadd.f32 %v1138, %v1171
        %v1188 = vadd.f32 %v1139, %v1172
        %v1189 = vadd.f32 %v1140, %v1173
        %v1190 = vadd.f32 %v1141, %v1174
        %v1191 = vadd.f32 %v1142, %v1175
        %v1192 = vadd.f32 %v1143, %v1176
        %v1193 = vld [vmem:[%s1144 + $0x1] sm:$0xff]
        %v1194 = vld [vmem:[%s1144 + $0x9] sm:$0xff]
        %v1195 = vld [vmem:[%s1144 + $0x19] sm:$0xff]
        %v1196 = vld [vmem:[%s1144 + $0x21] sm:$0xff]
        %v1197 = vld [vmem:[%s1144 + $0x31] sm:$0xff]
        %v1198 = vld [vmem:[%s1144 + $0x39] sm:$0xff]
        %v1199 = vld [vmem:[%s1144 + $0x49] sm:$0xff]
        %v1200 = vld [vmem:[%s1144 + $0x51] sm:$0xff]
        %v1201 = vld [vmem:[%s1144 + $0x61] sm:$0xff]
        %v1202 = vld [vmem:[%s1144 + $0x69] sm:$0xff]
        %v1203 = vld [vmem:[%s1144 + $0x79] sm:$0xff]
        %v1204 = vld [vmem:[%s1144 + $0x81] sm:$0xff]
        %v1205 = vld [vmem:[%s1144 + $0x91] sm:$0xff]
        %v1206 = vld [vmem:[%s1144 + $0x99] sm:$0xff]
        %v1207 = vld [vmem:[%s1144 + $0xa9] sm:$0xff]
        %v1208 = vld [vmem:[%s1144 + $0xb1] sm:$0xff]
        %v1209 = vmul.f32 %v1193, %v753
        %v1210 = vmul.f32 %v1194, %v753
        %v1211 = vmul.f32 %v1195, %v753
        %v1212 = vmul.f32 %v1196, %v753
        %v1213 = vmul.f32 %v1197, %v753
        %v1214 = vmul.f32 %v1198, %v753
        %v1215 = vmul.f32 %v1199, %v753
        %v1216 = vmul.f32 %v1200, %v753
        %v1217 = vmul.f32 %v1201, %v753
        %v1218 = vmul.f32 %v1202, %v753
        %v1219 = vmul.f32 %v1203, %v753
        %v1220 = vmul.f32 %v1204, %v753
        %v1221 = vmul.f32 %v1205, %v753
        %v1222 = vmul.f32 %v1206, %v753
        %v1223 = vmul.f32 %v1207, %v753
        %v1224 = vmul.f32 %v1208, %v753
        %v1225 = vadd.f32 %v1177, %v1209
        %v1226 = vadd.f32 %v1178, %v1210
        %v1227 = vadd.f32 %v1179, %v1211
        %v1228 = vadd.f32 %v1180, %v1212
        %v1229 = vadd.f32 %v1181, %v1213
        %v1230 = vadd.f32 %v1182, %v1214
        %v1231 = vadd.f32 %v1183, %v1215
        %v1232 = vadd.f32 %v1184, %v1216
        %v1233 = vadd.f32 %v1185, %v1217
        %v1234 = vadd.f32 %v1186, %v1218
        %v1235 = vadd.f32 %v1187, %v1219
        %v1236 = vadd.f32 %v1188, %v1220
        %v1237 = vadd.f32 %v1189, %v1221
        %v1238 = vadd.f32 %v1190, %v1222
        %v1239 = vadd.f32 %v1191, %v1223
        %v1240 = vadd.f32 %v1192, %v1224
        %v1241 = vld [vmem:[%s1144 + $0x2] sm:$0xff]
        %v1242 = vld [vmem:[%s1144 + $0xa] sm:$0xff]
        %v1243 = vld [vmem:[%s1144 + $0x1a] sm:$0xff]
        %v1244 = vld [vmem:[%s1144 + $0x22] sm:$0xff]
        %v1245 = vld [vmem:[%s1144 + $0x32] sm:$0xff]
        %v1246 = vld [vmem:[%s1144 + $0x3a] sm:$0xff]
        %v1247 = vld [vmem:[%s1144 + $0x4a] sm:$0xff]
        %v1248 = vld [vmem:[%s1144 + $0x52] sm:$0xff]
        %v1249 = vld [vmem:[%s1144 + $0x62] sm:$0xff]
        %v1250 = vld [vmem:[%s1144 + $0x6a] sm:$0xff]
        %v1251 = vld [vmem:[%s1144 + $0x7a] sm:$0xff]
        %v1252 = vld [vmem:[%s1144 + $0x82] sm:$0xff]
        %v1253 = vld [vmem:[%s1144 + $0x92] sm:$0xff]
        %v1254 = vld [vmem:[%s1144 + $0x9a] sm:$0xff]
        %v1255 = vld [vmem:[%s1144 + $0xaa] sm:$0xff]
        %v1256 = vld [vmem:[%s1144 + $0xb2] sm:$0xff]
        %v1257 = vmul.f32 %v1241, %v805
        %v1258 = vmul.f32 %v1242, %v805
        %v1259 = vmul.f32 %v1243, %v805
        %v1260 = vmul.f32 %v1244, %v805
        %v1261 = vmul.f32 %v1245, %v805
        %v1262 = vmul.f32 %v1246, %v805
        %v1263 = vmul.f32 %v1247, %v805
        %v1264 = vmul.f32 %v1248, %v805
        %v1265 = vmul.f32 %v1249, %v805
        %v1266 = vmul.f32 %v1250, %v805
        %v1267 = vmul.f32 %v1251, %v805
        %v1268 = vmul.f32 %v1252, %v805
        %v1269 = vmul.f32 %v1253, %v805
        %v1270 = vmul.f32 %v1254, %v805
        %v1271 = vmul.f32 %v1255, %v805
        %v1272 = vmul.f32 %v1256, %v805
        %v1273 = vadd.f32 %v1225, %v1257
        %v1274 = vadd.f32 %v1226, %v1258
        %v1275 = vadd.f32 %v1227, %v1259
        %v1276 = vadd.f32 %v1228, %v1260
        %v1277 = vadd.f32 %v1229, %v1261
        %v1278 = vadd.f32 %v1230, %v1262
        %v1279 = vadd.f32 %v1231, %v1263
        %v1280 = vadd.f32 %v1232, %v1264
        %v1281 = vadd.f32 %v1233, %v1265
        %v1282 = vadd.f32 %v1234, %v1266
        %v1283 = vadd.f32 %v1235, %v1267
        %v1284 = vadd.f32 %v1236, %v1268
        %v1285 = vadd.f32 %v1237, %v1269
        %v1286 = vadd.f32 %v1238, %v1270
        %v1287 = vadd.f32 %v1239, %v1271
        %v1288 = vadd.f32 %v1240, %v1272
        %s1289 = scalar_lea.vmem %s238, 128 [#allocation8]
        %1290 = vst [vmem:[%s1289] sm:$0xff] %v1273
        %1291 = vst [vmem:[%s1289 + $0x8] sm:$0xff] %v1274
        %1292 = vst [vmem:[%s1289 + $0x10] sm:$0xff] %v1275
        %1293 = vst [vmem:[%s1289 + $0x18] sm:$0xff] %v1276
        %1294 = vst [vmem:[%s1289 + $0x20] sm:$0xff] %v1277
        %1295 = vst [vmem:[%s1289 + $0x28] sm:$0xff] %v1278
        %1296 = vst [vmem:[%s1289 + $0x30] sm:$0xff] %v1279
        %1297 = vst [vmem:[%s1289 + $0x38] sm:$0xff] %v1280
        %1298 = vst [vmem:[%s1289 + $0x40] sm:$0xff] %v1281
        %1299 = vst [vmem:[%s1289 + $0x48] sm:$0xff] %v1282
        %1300 = vst [vmem:[%s1289 + $0x50] sm:$0xff] %v1283
        %1301 = vst [vmem:[%s1289 + $0x58] sm:$0xff] %v1284
        %1302 = vst [vmem:[%s1289 + $0x60] sm:$0xff] %v1285
        %1303 = vst [vmem:[%s1289 + $0x68] sm:$0xff] %v1286
        %1304 = vst [vmem:[%s1289 + $0x70] sm:$0xff] %v1287
        %1305 = vst [vmem:[%s1289 + $0x78] sm:$0xff] %v1288
        %s1306 = sand.u32 %s123, 1
        %s1307 = scalar_lea.sflag [#allocation5], %s1306
        %s1308 = sand.u32 %s123, 1
        %s1309 = smul.addr %s1308, 256
        %s1310 = scalar_lea.vmem [#allocation8], %s1309
        // Predicated region
        $region41: #{tpu_custom_call.1} parent=31 // pred_check
          %p1311 = pneg %p133
        $region42: #{tpu_custom_call.1} parent=31 // pred_check_branch
          %1313 = sbr.rel (%p1311) target = $region44
        $region43: #{tpu_custom_call.1} parent=31 // pred_region
          %s1315 = ssub.s32 4096, 4096
          %1316 = vsyncadd %s1307, %s1315
          %s1317 = smul.addr %s25, 32
          %s1318 = sadd.s32 %s26, %s1317
          %s1319 = smul.addr %s1318, 128
          %s1320 = scalar_lea.hbm %s3, %s1319
          %s1321 = sshll.u32 %s1310, 4
          %s1322 = int_to_ptr.vmem [resolvable:$true] %s1321
          %1327 = dma.vmem_to_hbm [thread:$0]  %s1322, 4096, %s1320, %s1307, 128, 128, 8
        $region44: #{tpu_custom_call.1} parent=31 // pred_fallthru
          _
      $region32: #{tpu_custom_call.1} parent=5 // pred_fallthru
        _
      %p1328 = scmp.le.s32.totalorder 2, %s16
      // Predicated region
      $region45: #{tpu_custom_call.1} parent=5 // pred_check
        %p1329 = pneg %p1328
      $region46: #{tpu_custom_call.1} parent=5 // pred_check_branch
        %1331 = sbr.rel (%p1329) target = $region48
      $region47: #{tpu_custom_call.1} parent=5 // pred_region
        %s1332 = ssub.s32 %s16, 2
        // Predicated region
        $region49: #{tpu_custom_call.1} parent=47 // pred_check
          %p1333 = pneg %p139
        $region50: #{tpu_custom_call.1} parent=47 // pred_check_branch
          %1335 = sbr.rel (%p1333) target = $region52
        $region51: #{tpu_custom_call.1} parent=47 // pred_region
          %s1336 = sand.u32 %s124, 1
          %s1337 = scalar_lea.sflag [#allocation5], %s1336
          %s1338 = sand.u32 %s124, 1
          %s1339 = smul.addr %s1338, 256
          %s1340 = scalar_lea.vmem [#allocation8], %s1339
          %1341 = dma.done %s1337, 4096
        $region52: #{tpu_custom_call.1} parent=47 // pred_fallthru
          _
      $region48: #{tpu_custom_call.1} parent=5 // pred_fallthru
        _
    $region6: #{tpu_custom_call.1} parent=1 // loop_footer
      %s20 = sadd.s32 1, %s16
    $region7: #{tpu_custom_call.1} parent=1 // loop_footer_branch
      %15 = sbr.rel target = $region3
    $region8: #{tpu_custom_call.1} parent=1 // loop_exit
      _
    %1342 = vsyncpa [#allocation4], 1
    %s1343 = scalar_lea.sflag [#allocation4], 1
    %1344 = vsyncpa %s1343, 1
    %1345 = vsyncpa [#allocation7], 1
    %1346 = vsyncpa [#allocation5], 1
    %s1347 = scalar_lea.sflag [#allocation5], 1
    %1348 = vsyncpa %s1347, 1

</llo_original>
